<compile_context>
chip_gen: v6e
topology: v6e:2x2x1
jax: 0.10.0
libtpu: 0.0.40
codegen_flags: <defaults>
</compile_context>

<pallas_src>
import functools

import jax
import jax.numpy as jnp
from jax.experimental import pallas as pl
from jax.experimental.pallas import tpu as pltpu


# ------------------------------ in-kernel helpers ------------------------------

def _im2col_reflect(a, W, edges, mxu_dtype):
    """3x3 reflect(1)-padded im2col of a (C, H*W) activation -> (9*C, H*W).

    Pixel shifts are pltpu.roll along the lane axis (XLU); reflect boundaries
    are fixed with the precomputed edge masks + jnp.where, reusing the
    opposite-direction roll (reflect maps -1 -> +1 and W -> W-2).  The 9 taps
    are stacked tap-major along sublanes (aligned concat) in `mxu_dtype`.
    """
    C, HW = a.shape
    is_top, is_bot, is_left, is_right = edges
    up_raw = pltpu.roll(a, W, 1)          # [:, p] = a[:, p - W]  (row above, wraps)
    dn_raw = pltpu.roll(a, HW - W, 1)     # [:, p] = a[:, p + W]  (row below, wraps)
    planes = (jnp.where(is_top, dn_raw, up_raw),   # ky=0: reflect y=-1 -> y=1
              a,                                    # ky=1
              jnp.where(is_bot, up_raw, dn_raw))    # ky=2: reflect y=H -> y=H-2
    taps = []
    for r in planes:
        lf_raw = pltpu.roll(r, 1, 1)       # value at x-1 (wraps)
        rt_raw = pltpu.roll(r, HW - 1, 1)  # value at x+1 (wraps)
        lf = jnp.where(is_left, rt_raw, lf_raw)    # reflect x=-1 -> x=1
        rt = jnp.where(is_right, lf_raw, rt_raw)   # reflect x=W  -> x=W-2
        taps += [lf.astype(mxu_dtype), r.astype(mxu_dtype), rt.astype(mxu_dtype)]
    return jnp.concatenate(taps, axis=0)           # (9C, HW)


def _res_sep_block_kernel(x_ref, w1_ref, w2_ref, aff_ref, edge_ref, o_ref, *,
                          W, eps, mxu_dtype):
    x = x_ref[0]                                   # (C, HW) f32, lane-dense
    HW = x.shape[1]
    inv_hw = 1.0 / HW
    edges = tuple(edge_ref[i:i + 1, :] == 1 for i in range(4))

    def sep_conv(a, w_ref):
        # Depthwise 3x3 + 1x1 fused into a single K=9C matmul (f32 accumulate).
        # The depthwise bias is omitted: InstanceNorm's mean subtraction
        # removes any per-channel constant exactly.
        im = _im2col_reflect(a, W, edges, mxu_dtype)
        return jnp.dot(w_ref[...], im,
                       preferred_element_type=jnp.float32)      # (C, HW) f32

    def inorm_scale_shift(y, g, b):
        # One-pass stats (sum, sum of squares), affine folded into scale/shift.
        m = jnp.sum(y, axis=1, keepdims=True) * inv_hw
        q = jnp.sum(y * y, axis=1, keepdims=True) * inv_hw
        scale = jax.lax.rsqrt(q - m * m + eps) * g               # rsqrt -> EUP
        return scale, b - m * scale

    # conv_1 + IN(affine) + ReLU, intermediate stays resident in VMEM.
    y1 = sep_conv(x, w1_ref)
    s1, t1 = inorm_scale_shift(y1, aff_ref[:, 0:1], aff_ref[:, 1:2])
    h = jnp.maximum(y1 * s1 + t1, 0.0)

    # conv_2 + IN(affine); affine + residual fused with the single dense store.
    y2 = sep_conv(h, w2_ref)
    s2, t2 = inorm_scale_shift(y2, aff_ref[:, 2:3], aff_ref[:, 3:4])
    o_ref[0] = (y2 * s2 + t2 + x).astype(o_ref.dtype)


# ------------------------------ wrapper ----------------------------------------

def _fuse_dw_pw(dw_w, pw_w):
    """Fold depthwise-3x3 taps through the following 1x1 into a (C, 9*C) matrix.

    dw_w: (C, 1, 3, 3), pw_w: (O=C, C, 1, 1) (PyTorch layouts).
    Entry [o, (ky*3+kx)*C + c] == pw[o, c] * dw[c, ky, kx].
    """
    C = dw_w.shape[0]
    pw = pw_w[:, :, 0, 0].astype(jnp.float32)      # (O, C)
    dwk = dw_w[:, 0].astype(jnp.float32)           # (C, 3, 3)
    return jnp.einsum('ckl,oc->oklc', dwk, pw).reshape(C, 9 * C)


def residual_separable_block(params, x_nchw, *, eps=1e-5, mxu_dtype=jnp.bfloat16):
    """Forward pass of ResidualSeparableBlock.  x_nchw: (N, C, H, W) -> same."""
    N, C, H, W = x_nchw.shape
    HW = H * W
    # Channel-major (C, HW) per image is a free view of NCHW: no transposes.
    x = x_nchw.reshape(N, C, HW).astype(jnp.float32)
    w1 = _fuse_dw_pw(params['dw1_w'], params['pw1_w']).astype(mxu_dtype)
    w2 = _fuse_dw_pw(params['dw2_w'], params['pw2_w']).astype(mxu_dtype)
    aff = jnp.stack([params['g1'], params['be1'],
                     params['g2'], params['be2']], axis=1).astype(jnp.float32)
    pos = jnp.arange(HW, dtype=jnp.int32)
    row, col = pos // W, pos % W
    edge = jnp.stack([row == 0, row == H - 1,
                      col == 0, col == W - 1]).astype(jnp.int32)  # (4, HW)

    out = pl.pallas_call(
        functools.partial(_res_sep_block_kernel, W=W, eps=eps,
                          mxu_dtype=mxu_dtype),
        grid=(N,),
        out_shape=jax.ShapeDtypeStruct((N, C, HW), jnp.float32),
        in_specs=[pl.BlockSpec((1, C, HW), lambda n: (n, 0, 0)),
                  pl.BlockSpec((C, 9 * C), lambda n: (0, 0)),
                  pl.BlockSpec((C, 9 * C), lambda n: (0, 0)),
                  pl.BlockSpec((C, 4), lambda n: (0, 0)),
                  pl.BlockSpec((4, HW), lambda n: (0, 0))],
        out_specs=pl.BlockSpec((1, C, HW), lambda n: (n, 0, 0)),
        compiler_params=pltpu.CompilerParams(
            dimension_semantics=("parallel",)),
    )(x, w1, w2, aff, edge)
    return out.reshape(N, C, H, W)


# ------------------------------ pure-JAX reference ------------------------------

def _ref_forward(params, x_nchw, eps=1e-5):
    prec = jax.lax.Precision.HIGHEST
    x = x_nchw.astype(jnp.float32)

    def dw_pw(h, dw_w, dw_b, pw_w):
        C = h.shape[1]
        hp = jnp.pad(h, ((0, 0), (0, 0), (1, 1), (1, 1)), mode='reflect')
        y = jax.lax.conv_general_dilated(
            hp, dw_w, window_strides=(1, 1), padding='VALID',
            dimension_numbers=('NCHW', 'OIHW', 'NCHW'),
            feature_group_count=C, precision=prec)
        y = y + dw_b[None, :, None, None]
        return jax.lax.conv_general_dilated(
            y, pw_w, window_strides=(1, 1), padding='VALID',
            dimension_numbers=('NCHW', 'OIHW', 'NCHW'), precision=prec)

    def inorm(h, g, b):
        m = h.mean(axis=(2, 3), keepdims=True)
        v = ((h - m) ** 2).mean(axis=(2, 3), keepdims=True)
        return ((h - m) * jax.lax.rsqrt(v + eps) * g[None, :, None, None]
                + b[None, :, None, None])

    h = jax.nn.relu(inorm(dw_pw(x, params['dw1_w'], params['dw1_b'],
                                params['pw1_w']), params['g1'], params['be1']))
    h = inorm(dw_pw(h, params['dw2_w'], params['dw2_b'], params['pw2_w']),
              params['g2'], params['be2'])
    return h + x


# ------------------------------ parameters & main -------------------------------

def init_params(key, features):
    ks = jax.random.split(key, 10)
    n = lambda k, shape, s: s * jax.random.normal(k, shape, jnp.float32)
    C = features
    return dict(
        dw1_w=n(ks[0], (C, 1, 3, 3), 0.3), dw1_b=n(ks[1], (C,), 0.05),
        pw1_w=n(ks[2], (C, C, 1, 1), 0.15),
        g1=1.0 + n(ks[3], (C,), 0.1), be1=n(ks[4], (C,), 0.1),
        dw2_w=n(ks[5], (C, 1, 3, 3), 0.3), dw2_b=n(ks[6], (C,), 0.05),
        pw2_w=n(ks[7], (C, C, 1, 1), 0.15),
        g2=1.0 + n(ks[8], (C,), 0.1), be2=n(ks[9], (C,), 0.1),
    )


if __name__ == "__main__":
    key = jax.random.PRNGKey(0)
    pkey, xkey = jax.random.split(key)
    N, C, H, W = 2, 64, 16, 16                    # features=64 block, NCHW input
    params = init_params(pkey, C)
    x = jax.random.normal(xkey, (N, C, H, W), jnp.float32)

    # Fast path: bf16 MXU operands, f32 accumulation (per perf review).
    fwd = jax.jit(residual_separable_block)
    y = jax.block_until_ready(fwd(params, x))
    assert y.shape == (N, C, H, W), y.shape
    assert bool(jnp.all(jnp.isfinite(y)))

    y_ref = jax.block_until_ready(jax.jit(_ref_forward)(params, x))
    # bf16 operand rounding over K=9*C accumulations -> typical max-abs error
    # of a few 1e-2 against the f32 reference; bound it loosely here.
    err_bf16 = float(jnp.max(jnp.abs(y - y_ref)))
    assert err_bf16 < 1e-1, f"bf16-MXU max abs error vs reference = {err_bf16}"

    # f32-MXU path pins down algorithmic correctness at the original tolerance.
    fwd_f32 = jax.jit(functools.partial(residual_separable_block,
                                        mxu_dtype=jnp.float32))
    y32 = jax.block_until_ready(fwd_f32(params, x))
    err_f32 = float(jnp.max(jnp.abs(y32 - y_ref)))
    assert err_f32 < 2e-3, f"f32-MXU max abs error vs reference = {err_f32}"
    print("KERNEL_OK")
</pallas_src>

<mosaic_0001>
module attributes {stable_mosaic.version = 11 : i64} {
  func.func @_res_sep_block_kernel(%arg0: i32, %arg1: memref<1x64x256xf32, #tpu.memory_space<vmem>>, %arg2: memref<64x576xbf16, #tpu.memory_space<vmem>>, %arg3: memref<64x576xbf16, #tpu.memory_space<vmem>>, %arg4: memref<64x4xf32, #tpu.memory_space<vmem>>, %arg5: memref<4x256xi32, #tpu.memory_space<vmem>>, %arg6: memref<1x64x256xf32, #tpu.memory_space<vmem>>) attributes {dimension_semantics = [#tpu.dimension_semantics<parallel>], iteration_bounds = array<i64: 2>, scalar_prefetch = 0 : i64, scratch_operands = 0 : i64, tpu.core_type = #tpu.core_type<tc>, window_params = [{transform_indices = @transform_0, window_bounds = array<i64: 1, 64, 256>}, {pipeline_mode = #tpu.pipeline_mode<synchronous>, transform_indices = @transform_1, window_bounds = array<i64: 64, 576>}, {pipeline_mode = #tpu.pipeline_mode<synchronous>, transform_indices = @transform_2, window_bounds = array<i64: 64, 576>}, {pipeline_mode = #tpu.pipeline_mode<synchronous>, transform_indices = @transform_3, window_bounds = array<i64: 64, 4>}, {pipeline_mode = #tpu.pipeline_mode<synchronous>, transform_indices = @transform_4, window_bounds = array<i64: 4, 256>}, {transform_indices = @transform_5, window_bounds = array<i64: 1, 64, 256>}]} {
    %c0 = arith.constant 0 : index
    %c0_0 = arith.constant 0 : index
    %c0_1 = arith.constant 0 : index
    %0 = vector.load %arg1[%c0, %c0_0, %c0_1] : memref<1x64x256xf32, #tpu.memory_space<vmem>>, vector<1x64x256xf32>
    %1 = vector.shape_cast %0 : vector<1x64x256xf32> to vector<64x256xf32>
    %c0_2 = arith.constant 0 : index
    %c0_3 = arith.constant 0 : index
    %2 = vector.load %arg5[%c0_2, %c0_3] : memref<4x256xi32, #tpu.memory_space<vmem>>, vector<1x256xi32>
    %c1_i32 = arith.constant 1 : i32
    %3 = vector.broadcast %c1_i32 : i32 to vector<1x256xi32>
    %4 = arith.cmpi eq, %2, %3 : vector<1x256xi32>
    %c1 = arith.constant 1 : index
    %c0_4 = arith.constant 0 : index
    %5 = vector.load %arg5[%c1, %c0_4] : memref<4x256xi32, #tpu.memory_space<vmem>>, vector<1x256xi32>
    %c1_i32_5 = arith.constant 1 : i32
    %6 = vector.broadcast %c1_i32_5 : i32 to vector<1x256xi32>
    %7 = arith.cmpi eq, %5, %6 : vector<1x256xi32>
    %c2 = arith.constant 2 : index
    %c0_6 = arith.constant 0 : index
    %8 = vector.load %arg5[%c2, %c0_6] : memref<4x256xi32, #tpu.memory_space<vmem>>, vector<1x256xi32>
    %c1_i32_7 = arith.constant 1 : i32
    %9 = vector.broadcast %c1_i32_7 : i32 to vector<1x256xi32>
    %10 = arith.cmpi eq, %8, %9 : vector<1x256xi32>
    %c3 = arith.constant 3 : index
    %c0_8 = arith.constant 0 : index
    %11 = vector.load %arg5[%c3, %c0_8] : memref<4x256xi32, #tpu.memory_space<vmem>>, vector<1x256xi32>
    %c1_i32_9 = arith.constant 1 : i32
    %12 = vector.broadcast %c1_i32_9 : i32 to vector<1x256xi32>
    %13 = arith.cmpi eq, %11, %12 : vector<1x256xi32>
    %c16_i32 = arith.constant 16 : i32
    %14 = tpu.dynamic_rotate %1 by %c16_i32 dim 1 : vector<64x256xf32>, i32 -> vector<64x256xf32>
    %c240_i32 = arith.constant 240 : i32
    %15 = tpu.dynamic_rotate %1 by %c240_i32 dim 1 : vector<64x256xf32>, i32 -> vector<64x256xf32>
    %16 = vector.shape_cast %4 : vector<1x256xi1> to vector<1x256xi1>
    %17 = vector.broadcast %16 : vector<1x256xi1> to vector<64x256xi1>
    %18 = arith.select %17, %15, %14 : vector<64x256xi1>, vector<64x256xf32>
    %19 = vector.shape_cast %7 : vector<1x256xi1> to vector<1x256xi1>
    %20 = vector.broadcast %19 : vector<1x256xi1> to vector<64x256xi1>
    %21 = arith.select %20, %14, %15 : vector<64x256xi1>, vector<64x256xf32>
    %c1_i32_10 = arith.constant 1 : i32
    %22 = tpu.dynamic_rotate %18 by %c1_i32_10 dim 1 : vector<64x256xf32>, i32 -> vector<64x256xf32>
    %c255_i32 = arith.constant 255 : i32
    %23 = tpu.dynamic_rotate %18 by %c255_i32 dim 1 : vector<64x256xf32>, i32 -> vector<64x256xf32>
    %24 = vector.shape_cast %10 : vector<1x256xi1> to vector<1x256xi1>
    %25 = vector.broadcast %24 : vector<1x256xi1> to vector<64x256xi1>
    %26 = arith.select %25, %23, %22 : vector<64x256xi1>, vector<64x256xf32>
    %27 = vector.shape_cast %13 : vector<1x256xi1> to vector<1x256xi1>
    %28 = vector.broadcast %27 : vector<1x256xi1> to vector<64x256xi1>
    %29 = arith.select %28, %22, %23 : vector<64x256xi1>, vector<64x256xf32>
    %30 = arith.truncf %26 : vector<64x256xf32> to vector<64x256xbf16>
    %31 = arith.truncf %18 : vector<64x256xf32> to vector<64x256xbf16>
    %32 = arith.truncf %29 : vector<64x256xf32> to vector<64x256xbf16>
    %c1_i32_11 = arith.constant 1 : i32
    %33 = tpu.dynamic_rotate %1 by %c1_i32_11 dim 1 : vector<64x256xf32>, i32 -> vector<64x256xf32>
    %c255_i32_12 = arith.constant 255 : i32
    %34 = tpu.dynamic_rotate %1 by %c255_i32_12 dim 1 : vector<64x256xf32>, i32 -> vector<64x256xf32>
    %35 = vector.shape_cast %10 : vector<1x256xi1> to vector<1x256xi1>
    %36 = vector.broadcast %35 : vector<1x256xi1> to vector<64x256xi1>
    %37 = arith.select %36, %34, %33 : vector<64x256xi1>, vector<64x256xf32>
    %38 = vector.shape_cast %13 : vector<1x256xi1> to vector<1x256xi1>
    %39 = vector.broadcast %38 : vector<1x256xi1> to vector<64x256xi1>
    %40 = arith.select %39, %33, %34 : vector<64x256xi1>, vector<64x256xf32>
    %41 = arith.truncf %37 : vector<64x256xf32> to vector<64x256xbf16>
    %42 = arith.truncf %1 : vector<64x256xf32> to vector<64x256xbf16>
    %43 = arith.truncf %40 : vector<64x256xf32> to vector<64x256xbf16>
    %c1_i32_13 = arith.constant 1 : i32
    %44 = tpu.dynamic_rotate %21 by %c1_i32_13 dim 1 : vector<64x256xf32>, i32 -> vector<64x256xf32>
    %c255_i32_14 = arith.constant 255 : i32
    %45 = tpu.dynamic_rotate %21 by %c255_i32_14 dim 1 : vector<64x256xf32>, i32 -> vector<64x256xf32>
    %46 = vector.shape_cast %10 : vector<1x256xi1> to vector<1x256xi1>
    %47 = vector.broadcast %46 : vector<1x256xi1> to vector<64x256xi1>
    %48 = arith.select %47, %45, %44 : vector<64x256xi1>, vector<64x256xf32>
    %49 = vector.shape_cast %13 : vector<1x256xi1> to vector<1x256xi1>
    %50 = vector.broadcast %49 : vector<1x256xi1> to vector<64x256xi1>
    %51 = arith.select %50, %44, %45 : vector<64x256xi1>, vector<64x256xf32>
    %52 = arith.truncf %48 : vector<64x256xf32> to vector<64x256xbf16>
    %53 = arith.truncf %21 : vector<64x256xf32> to vector<64x256xbf16>
    %54 = arith.truncf %51 : vector<64x256xf32> to vector<64x256xbf16>
    %55 = tpu.concatenate %30, %31, %32, %41, %42, %43, %52, %53, %54 in 0 : vector<64x256xbf16>, vector<64x256xbf16>, vector<64x256xbf16>, vector<64x256xbf16>, vector<64x256xbf16>, vector<64x256xbf16>, vector<64x256xbf16>, vector<64x256xbf16>, vector<64x256xbf16> -> vector<576x256xbf16>
    %c0_15 = arith.constant 0 : index
    %c0_16 = arith.constant 0 : index
    %56 = vector.load %arg2[%c0_15, %c0_16] : memref<64x576xbf16, #tpu.memory_space<vmem>>, vector<64x576xbf16>
    %cst = arith.constant dense<0.000000e+00> : vector<64x256xf32>
    %57 = tpu.matmul %56, %55, %cst {dimension_numbers = #tpu.dot_dimension_numbers<[1], [0], [0], [1], [0, 0, 1, 1], [], []>} : vector<64x576xbf16>, vector<576x256xbf16>, vector<64x256xf32> -> vector<64x256xf32>
    %c0_17 = arith.constant 0 : index
    %c0_18 = arith.constant 0 : index
    %58 = vector.load %arg4[%c0_17, %c0_18] : memref<64x4xf32, #tpu.memory_space<vmem>>, vector<64x1xf32>
    %c0_19 = arith.constant 0 : index
    %c1_20 = arith.constant 1 : index
    %59 = vector.load %arg4[%c0_19, %c1_20] : memref<64x4xf32, #tpu.memory_space<vmem>>, vector<64x1xf32>
    %cst_21 = arith.constant dense<0.000000e+00> : vector<64xf32>
    %60 = vector.multi_reduction <add>, %57, %cst_21 [1] : vector<64x256xf32> to vector<64xf32>
    %61 = vector.shape_cast %60 : vector<64xf32> to vector<64x1xf32>
    %cst_22 = arith.constant 3.906250e-03 : f32
    %62 = vector.broadcast %cst_22 : f32 to vector<64x1xf32>
    %63 = arith.mulf %61, %62 : vector<64x1xf32>
    %64 = arith.mulf %57, %57 : vector<64x256xf32>
    %cst_23 = arith.constant dense<0.000000e+00> : vector<64xf32>
    %65 = vector.multi_reduction <add>, %64, %cst_23 [1] : vector<64x256xf32> to vector<64xf32>
    %66 = vector.shape_cast %65 : vector<64xf32> to vector<64x1xf32>
    %cst_24 = arith.constant 3.906250e-03 : f32
    %67 = vector.broadcast %cst_24 : f32 to vector<64x1xf32>
    %68 = arith.mulf %66, %67 : vector<64x1xf32>
    %69 = arith.mulf %63, %63 : vector<64x1xf32>
    %70 = arith.subf %68, %69 : vector<64x1xf32>
    %cst_25 = arith.constant 9.99999974E-6 : f32
    %71 = vector.broadcast %cst_25 : f32 to vector<64x1xf32>
    %72 = arith.addf %70, %71 : vector<64x1xf32>
    %73 = math.rsqrt %72 : vector<64x1xf32>
    %74 = arith.mulf %73, %58 : vector<64x1xf32>
    %75 = arith.mulf %63, %74 : vector<64x1xf32>
    %76 = arith.subf %59, %75 : vector<64x1xf32>
    %77 = vector.broadcast %74 : vector<64x1xf32> to vector<64x256xf32>
    %78 = arith.mulf %57, %77 : vector<64x256xf32>
    %79 = vector.broadcast %76 : vector<64x1xf32> to vector<64x256xf32>
    %80 = arith.addf %78, %79 : vector<64x256xf32>
    %cst_26 = arith.constant 0.000000e+00 : f32
    %81 = vector.broadcast %cst_26 : f32 to vector<64x256xf32>
    %82 = arith.maximumf %80, %81 : vector<64x256xf32>
    %c16_i32_27 = arith.constant 16 : i32
    %83 = tpu.dynamic_rotate %82 by %c16_i32_27 dim 1 : vector<64x256xf32>, i32 -> vector<64x256xf32>
    %c240_i32_28 = arith.constant 240 : i32
    %84 = tpu.dynamic_rotate %82 by %c240_i32_28 dim 1 : vector<64x256xf32>, i32 -> vector<64x256xf32>
    %85 = vector.shape_cast %4 : vector<1x256xi1> to vector<1x256xi1>
    %86 = vector.broadcast %85 : vector<1x256xi1> to vector<64x256xi1>
    %87 = arith.select %86, %84, %83 : vector<64x256xi1>, vector<64x256xf32>
    %88 = vector.shape_cast %7 : vector<1x256xi1> to vector<1x256xi1>
    %89 = vector.broadcast %88 : vector<1x256xi1> to vector<64x256xi1>
    %90 = arith.select %89, %83, %84 : vector<64x256xi1>, vector<64x256xf32>
    %c1_i32_29 = arith.constant 1 : i32
    %91 = tpu.dynamic_rotate %87 by %c1_i32_29 dim 1 : vector<64x256xf32>, i32 -> vector<64x256xf32>
    %c255_i32_30 = arith.constant 255 : i32
    %92 = tpu.dynamic_rotate %87 by %c255_i32_30 dim 1 : vector<64x256xf32>, i32 -> vector<64x256xf32>
    %93 = vector.shape_cast %10 : vector<1x256xi1> to vector<1x256xi1>
    %94 = vector.broadcast %93 : vector<1x256xi1> to vector<64x256xi1>
    %95 = arith.select %94, %92, %91 : vector<64x256xi1>, vector<64x256xf32>
    %96 = vector.shape_cast %13 : vector<1x256xi1> to vector<1x256xi1>
    %97 = vector.broadcast %96 : vector<1x256xi1> to vector<64x256xi1>
    %98 = arith.select %97, %91, %92 : vector<64x256xi1>, vector<64x256xf32>
    %99 = arith.truncf %95 : vector<64x256xf32> to vector<64x256xbf16>
    %100 = arith.truncf %87 : vector<64x256xf32> to vector<64x256xbf16>
    %101 = arith.truncf %98 : vector<64x256xf32> to vector<64x256xbf16>
    %c1_i32_31 = arith.constant 1 : i32
    %102 = tpu.dynamic_rotate %82 by %c1_i32_31 dim 1 : vector<64x256xf32>, i32 -> vector<64x256xf32>
    %c255_i32_32 = arith.constant 255 : i32
    %103 = tpu.dynamic_rotate %82 by %c255_i32_32 dim 1 : vector<64x256xf32>, i32 -> vector<64x256xf32>
    %104 = vector.shape_cast %10 : vector<1x256xi1> to vector<1x256xi1>
    %105 = vector.broadcast %104 : vector<1x256xi1> to vector<64x256xi1>
    %106 = arith.select %105, %103, %102 : vector<64x256xi1>, vector<64x256xf32>
    %107 = vector.shape_cast %13 : vector<1x256xi1> to vector<1x256xi1>
    %108 = vector.broadcast %107 : vector<1x256xi1> to vector<64x256xi1>
    %109 = arith.select %108, %102, %103 : vector<64x256xi1>, vector<64x256xf32>
    %110 = arith.truncf %106 : vector<64x256xf32> to vector<64x256xbf16>
    %111 = arith.truncf %82 : vector<64x256xf32> to vector<64x256xbf16>
    %112 = arith.truncf %109 : vector<64x256xf32> to vector<64x256xbf16>
    %c1_i32_33 = arith.constant 1 : i32
    %113 = tpu.dynamic_rotate %90 by %c1_i32_33 dim 1 : vector<64x256xf32>, i32 -> vector<64x256xf32>
    %c255_i32_34 = arith.constant 255 : i32
    %114 = tpu.dynamic_rotate %90 by %c255_i32_34 dim 1 : vector<64x256xf32>, i32 -> vector<64x256xf32>
    %115 = vector.shape_cast %10 : vector<1x256xi1> to vector<1x256xi1>
    %116 = vector.broadcast %115 : vector<1x256xi1> to vector<64x256xi1>
    %117 = arith.select %116, %114, %113 : vector<64x256xi1>, vector<64x256xf32>
    %118 = vector.shape_cast %13 : vector<1x256xi1> to vector<1x256xi1>
    %119 = vector.broadcast %118 : vector<1x256xi1> to vector<64x256xi1>
    %120 = arith.select %119, %113, %114 : vector<64x256xi1>, vector<64x256xf32>
    %121 = arith.truncf %117 : vector<64x256xf32> to vector<64x256xbf16>
    %122 = arith.truncf %90 : vector<64x256xf32> to vector<64x256xbf16>
    %123 = arith.truncf %120 : vector<64x256xf32> to vector<64x256xbf16>
    %124 = tpu.concatenate %99, %100, %101, %110, %111, %112, %121, %122, %123 in 0 : vector<64x256xbf16>, vector<64x256xbf16>, vector<64x256xbf16>, vector<64x256xbf16>, vector<64x256xbf16>, vector<64x256xbf16>, vector<64x256xbf16>, vector<64x256xbf16>, vector<64x256xbf16> -> vector<576x256xbf16>
    %c0_35 = arith.constant 0 : index
    %c0_36 = arith.constant 0 : index
    %125 = vector.load %arg3[%c0_35, %c0_36] : memref<64x576xbf16, #tpu.memory_space<vmem>>, vector<64x576xbf16>
    %cst_37 = arith.constant dense<0.000000e+00> : vector<64x256xf32>
    %126 = tpu.matmul %125, %124, %cst_37 {dimension_numbers = #tpu.dot_dimension_numbers<[1], [0], [0], [1], [0, 0, 1, 1], [], []>} : vector<64x576xbf16>, vector<576x256xbf16>, vector<64x256xf32> -> vector<64x256xf32>
    %c0_38 = arith.constant 0 : index
    %c2_39 = arith.constant 2 : index
    %127 = vector.load %arg4[%c0_38, %c2_39] : memref<64x4xf32, #tpu.memory_space<vmem>>, vector<64x1xf32>
    %c0_40 = arith.constant 0 : index
    %c3_41 = arith.constant 3 : index
    %128 = vector.load %arg4[%c0_40, %c3_41] : memref<64x4xf32, #tpu.memory_space<vmem>>, vector<64x1xf32>
    %cst_42 = arith.constant dense<0.000000e+00> : vector<64xf32>
    %129 = vector.multi_reduction <add>, %126, %cst_42 [1] : vector<64x256xf32> to vector<64xf32>
    %130 = vector.shape_cast %129 : vector<64xf32> to vector<64x1xf32>
    %cst_43 = arith.constant 3.906250e-03 : f32
    %131 = vector.broadcast %cst_43 : f32 to vector<64x1xf32>
    %132 = arith.mulf %130, %131 : vector<64x1xf32>
    %133 = arith.mulf %126, %126 : vector<64x256xf32>
    %cst_44 = arith.constant dense<0.000000e+00> : vector<64xf32>
    %134 = vector.multi_reduction <add>, %133, %cst_44 [1] : vector<64x256xf32> to vector<64xf32>
    %135 = vector.shape_cast %134 : vector<64xf32> to vector<64x1xf32>
    %cst_45 = arith.constant 3.906250e-03 : f32
    %136 = vector.broadcast %cst_45 : f32 to vector<64x1xf32>
    %137 = arith.mulf %135, %136 : vector<64x1xf32>
    %138 = arith.mulf %132, %132 : vector<64x1xf32>
    %139 = arith.subf %137, %138 : vector<64x1xf32>
    %cst_46 = arith.constant 9.99999974E-6 : f32
    %140 = vector.broadcast %cst_46 : f32 to vector<64x1xf32>
    %141 = arith.addf %139, %140 : vector<64x1xf32>
    %142 = math.rsqrt %141 : vector<64x1xf32>
    %143 = arith.mulf %142, %127 : vector<64x1xf32>
    %144 = arith.mulf %132, %143 : vector<64x1xf32>
    %145 = arith.subf %128, %144 : vector<64x1xf32>
    %146 = vector.broadcast %143 : vector<64x1xf32> to vector<64x256xf32>
    %147 = arith.mulf %126, %146 : vector<64x256xf32>
    %148 = vector.broadcast %145 : vector<64x1xf32> to vector<64x256xf32>
    %149 = arith.addf %147, %148 : vector<64x256xf32>
    %150 = arith.addf %149, %1 : vector<64x256xf32>
    %c0_47 = arith.constant 0 : index
    %c0_48 = arith.constant 0 : index
    %c0_49 = arith.constant 0 : index
    %151 = vector.load %arg6[%c0_47, %c0_48, %c0_49] : memref<1x64x256xf32, #tpu.memory_space<vmem>>, vector<1x64x256xf32>
    %152 = vector.shape_cast %151 : vector<1x64x256xf32> to vector<64x256xf32>
    %153 = vector.shape_cast %150 : vector<64x256xf32> to vector<1x64x256xf32>
    tpu.vector_store %arg6[%c0_47, %c0_48, %c0_49], %153 {strides = array<i32>} : memref<1x64x256xf32, #tpu.memory_space<vmem>>, vector<1x64x256xf32>,
    return
  }
  func.func @transform_0(%arg0: i32) -> (i32, i32, i32) {
    %c0_i32 = arith.constant 0 : i32
    %c0_i32_0 = arith.constant 0 : i32
    %c0_i32_1 = arith.constant 0 : i32
    return %arg0, %c0_i32, %c0_i32_0 : i32, i32, i32
  }
  func.func @transform_1(%arg0: i32) -> (i32, i32) {
    %c0_i32 = arith.constant 0 : i32
    %c0_i32_0 = arith.constant 0 : i32
    %c0_i32_1 = arith.constant 0 : i32
    return %c0_i32, %c0_i32_0 : i32, i32
  }
  func.func @transform_2(%arg0: i32) -> (i32, i32) {
    %c0_i32 = arith.constant 0 : i32
    %c0_i32_0 = arith.constant 0 : i32
    %c0_i32_1 = arith.constant 0 : i32
    return %c0_i32, %c0_i32_0 : i32, i32
  }
  func.func @transform_3(%arg0: i32) -> (i32, i32) {
    %c0_i32 = arith.constant 0 : i32
    %c0_i32_0 = arith.constant 0 : i32
    %c0_i32_1 = arith.constant 0 : i32
    return %c0_i32, %c0_i32_0 : i32, i32
  }
  func.func @transform_4(%arg0: i32) -> (i32, i32) {
    %c0_i32 = arith.constant 0 : i32
    %c0_i32_0 = arith.constant 0 : i32
    %c0_i32_1 = arith.constant 0 : i32
    return %c0_i32, %c0_i32_0 : i32, i32
  }
  func.func @transform_5(%arg0: i32) -> (i32, i32, i32) {
    %c0_i32 = arith.constant 0 : i32
    %c0_i32_0 = arith.constant 0 : i32
    %c0_i32_1 = arith.constant 0 : i32
    return %arg0, %c0_i32, %c0_i32_0 : i32, i32, i32
  }
}

</mosaic_0001>

<llo_original>
// kernel: residual_separable_block.1
$region0: #{residual_separable_block.1}
  #allocation0 [shape = 'u32[]', space=smem, size = 0x4, offset = 0x4, fixed_abs, tag = 'smem constant byte address 0x4 - core index']
  #allocation1 [shape = 'u32[144,128]{1,0:T(1,128)}', space=vmem, size = 0x12000, scoped, tag = 'internal scratch']
  %s0 = inlined_call_operand.vmem [shape: f32[2,64,256], index: 0, kind: input, shape index: {}]
  %s1 = inlined_call_operand.vmem [shape: bf16[64,576], index: 1, kind: input, shape index: {}]
  %s2 = inlined_call_operand.vmem [shape: bf16[64,576], index: 2, kind: input, shape index: {}]
  %s3 = inlined_call_operand.vmem [shape: f32[64,4], index: 3, kind: input, shape index: {}]
  %s4 = inlined_call_operand.vmem [shape: s32[4,256], index: 4, kind: input, shape index: {}]
  %s5 = inlined_call_operand.vmem [shape: f32[2,64,256], index: 5, kind: output, shape index: {}]
  %s6 = sld [smem:[#allocation0]]
  $region53: #{residual_separable_block.1} parent=0
    _
  %s8 = ssub.s32 1, %s6
  %s9 = scalar_select 0, %s8, %s6
  loop: start=0, step=1, limit=4
  $region2: #{residual_separable_block.1} parent=0 // loop_pre_header
    _
  $region3: #{residual_separable_block.1} parent=0 // loop_header
    %s11 = sphi 0, %s15
    %p12 = scmp.ge.s32.totalorder %s11, 4
    %s21 = sphi 0, %s23
    %s24 = sphi 0, %s21
    %s25 = sphi 0, %s24
    %s41 = sphi 0, %s25
    %s45 = sphi 0, %s45
    %s47 = sphi 0, %s45
    %s48 = sphi 0, %s47
    %s62 = sphi 0, %s48
    %s66 = sphi 0, %s66
    %s68 = sphi 0, %s66
    %s69 = sphi 0, %s68
    %s83 = sphi 0, %s69
    %s87 = sphi 0, %s87
    %s89 = sphi 0, %s87
    %s90 = sphi 0, %s89
    %s104 = sphi 0, %s90
    %s108 = sphi 0, %s108
    %s110 = sphi 0, %s108
    %s111 = sphi 0, %s110
    %s125 = sphi 0, %s111
    %s131 = sphi 0, %s133
    %s134 = sphi 0, %s131
    %s135 = sphi 0, %s134
    %s151 = sphi 0, %s135
  $region4: #{residual_separable_block.1} parent=0 // loop_header_branch
    %14 = sbr.rel (%p12) target = $region8
  $region5: #{residual_separable_block.1} parent=0 // loop_body
    %s16 = ssub.s32 %s11, 1
    %s17 = ssub.s32 %s11, 2
    %s18 = sadd.s32 %s11, 1
    %s19 = ssub.s32 %s11, %s18
    %p20 = scmp.eq.s32.totalorder %s19, 0
    %s22 = sadd.s32 %s21, 1
    %s23 = scalar_select %p20, %s21, %s22
    %p26 = pneg %p20
    %p27 = scmp.eq.s32.totalorder %s11, 1
    %p28 = por %p26, %p27
    %p29 = scmp.ne.s32.totalorder %s21, %s24
    %p30 = scmp.eq.s32.totalorder %s11, 0
    %p31 = por %p29, %p30
    %p32 = scmp.ne.s32.totalorder %s21, %s24
    %p33 = scmp.eq.s32.totalorder %s16, 1
    %p34 = por %p32, %p33
    %p35 = scmp.ne.s32.totalorder %s24, %s25
    %p36 = scmp.eq.s32.totalorder %s16, 0
    %p37 = por %p35, %p36
    %p38 = scmp.ne.s32.totalorder %s24, %s25
    %p39 = scmp.eq.s32.totalorder %s17, 1
    %p40 = por %p38, %p39
    %p42 = scmp.ne.s32.totalorder %s25, %s41
    %p43 = scmp.eq.s32.totalorder %s17, 0
    %p44 = por %p42, %p43
    %s46 = sadd.s32 %s45, 1
    %p49 = scmp.eq.s32.totalorder %s11, 1
    %p50 = scmp.ne.s32.totalorder %s45, %s47
    %p51 = scmp.eq.s32.totalorder %s11, 0
    %p52 = por %p50, %p51
    %p53 = scmp.ne.s32.totalorder %s45, %s47
    %p54 = scmp.eq.s32.totalorder %s16, 1
    %p55 = por %p53, %p54
    %p56 = scmp.ne.s32.totalorder %s47, %s48
    %p57 = scmp.eq.s32.totalorder %s16, 0
    %p58 = por %p56, %p57
    %p59 = scmp.ne.s32.totalorder %s47, %s48
    %p60 = scmp.eq.s32.totalorder %s17, 1
    %p61 = por %p59, %p60
    %p63 = scmp.ne.s32.totalorder %s48, %s62
    %p64 = scmp.eq.s32.totalorder %s17, 0
    %p65 = por %p63, %p64
    %s67 = sadd.s32 %s66, 1
    %p70 = scmp.eq.s32.totalorder %s11, 1
    %p71 = scmp.ne.s32.totalorder %s66, %s68
    %p72 = scmp.eq.s32.totalorder %s11, 0
    %p73 = por %p71, %p72
    %p74 = scmp.ne.s32.totalorder %s66, %s68
    %p75 = scmp.eq.s32.totalorder %s16, 1
    %p76 = por %p74, %p75
    %p77 = scmp.ne.s32.totalorder %s68, %s69
    %p78 = scmp.eq.s32.totalorder %s16, 0
    %p79 = por %p77, %p78
    %p80 = scmp.ne.s32.totalorder %s68, %s69
    %p81 = scmp.eq.s32.totalorder %s17, 1
    %p82 = por %p80, %p81
    %p84 = scmp.ne.s32.totalorder %s69, %s83
    %p85 = scmp.eq.s32.totalorder %s17, 0
    %p86 = por %p84, %p85
    %s88 = sadd.s32 %s87, 1
    %p91 = scmp.eq.s32.totalorder %s11, 1
    %p92 = scmp.ne.s32.totalorder %s87, %s89
    %p93 = scmp.eq.s32.totalorder %s11, 0
    %p94 = por %p92, %p93
    %p95 = scmp.ne.s32.totalorder %s87, %s89
    %p96 = scmp.eq.s32.totalorder %s16, 1
    %p97 = por %p95, %p96
    %p98 = scmp.ne.s32.totalorder %s89, %s90
    %p99 = scmp.eq.s32.totalorder %s16, 0
    %p100 = por %p98, %p99
    %p101 = scmp.ne.s32.totalorder %s89, %s90
    %p102 = scmp.eq.s32.totalorder %s17, 1
    %p103 = por %p101, %p102
    %p105 = scmp.ne.s32.totalorder %s90, %s104
    %p106 = scmp.eq.s32.totalorder %s17, 0
    %p107 = por %p105, %p106
    %s109 = sadd.s32 %s108, 1
    %p112 = scmp.eq.s32.totalorder %s11, 1
    %p113 = scmp.ne.s32.totalorder %s108, %s110
    %p114 = scmp.eq.s32.totalorder %s11, 0
    %p115 = por %p113, %p114
    %p116 = scmp.ne.s32.totalorder %s108, %s110
    %p117 = scmp.eq.s32.totalorder %s16, 1
    %p118 = por %p116, %p117
    %p119 = scmp.ne.s32.totalorder %s110, %s111
    %p120 = scmp.eq.s32.totalorder %s16, 0
    %p121 = por %p119, %p120
    %p122 = scmp.ne.s32.totalorder %s110, %s111
    %p123 = scmp.eq.s32.totalorder %s17, 1
    %p124 = por %p122, %p123
    %p126 = scmp.ne.s32.totalorder %s111, %s125
    %p127 = scmp.eq.s32.totalorder %s17, 0
    %p128 = por %p126, %p127
    %s129 = ssub.s32 %s11, %s18
    %p130 = scmp.eq.s32.totalorder %s129, 0
    %s132 = sadd.s32 %s131, 1
    %s133 = scalar_select %p130, %s131, %s132
    %p136 = pneg %p130
    %p137 = scmp.eq.s32.totalorder %s11, 1
    %p138 = por %p136, %p137
    %p139 = scmp.ne.s32.totalorder %s131, %s134
    %p140 = scmp.eq.s32.totalorder %s11, 0
    %p141 = por %p139, %p140
    %p142 = scmp.ne.s32.totalorder %s131, %s134
    %p143 = scmp.eq.s32.totalorder %s16, 1
    %p144 = por %p142, %p143
    %p145 = scmp.ne.s32.totalorder %s134, %s135
    %p146 = scmp.eq.s32.totalorder %s16, 0
    %p147 = por %p145, %p146
    %p148 = scmp.ne.s32.totalorder %s134, %s135
    %p149 = scmp.eq.s32.totalorder %s17, 1
    %p150 = por %p148, %p149
    %p152 = scmp.ne.s32.totalorder %s135, %s151
    %p153 = scmp.eq.s32.totalorder %s17, 0
    %p154 = por %p152, %p153
    %p155 = scmp.le.s32.totalorder 1, %s11
    %p156 = scmp.lt.s32.totalorder %s11, 3
    %p157 = pnand %p155, %p156
    %p158 = pneg %p157
    // Predicated region
    $region9: #{residual_separable_block.1} parent=5 // pred_check
      _
    $region10: #{residual_separable_block.1} parent=5 // pred_check_branch
      %160 = sbr.rel (%p157) target = $region12
    $region11: #{residual_separable_block.1} parent=5 // pred_region
      %s161 = ssub.s32 %s11, 1
      // Predicated region
      $region13: #{residual_separable_block.1} parent=11 // pred_check
        %p162 = pneg %p58
      $region14: #{residual_separable_block.1} parent=11 // pred_check_branch
        %164 = sbr.rel (%p162) target = $region16
      $region15: #{residual_separable_block.1} parent=11 // pred_region
        _
      $region16: #{residual_separable_block.1} parent=11 // pred_fallthru
        _
      // Predicated region
      $region17: #{residual_separable_block.1} parent=11 // pred_check
        %p165 = pneg %p79
      $region18: #{residual_separable_block.1} parent=11 // pred_check_branch
        %167 = sbr.rel (%p165) target = $region20
      $region19: #{residual_separable_block.1} parent=11 // pred_region
        _
      $region20: #{residual_separable_block.1} parent=11 // pred_fallthru
        _
      // Predicated region
      $region21: #{residual_separable_block.1} parent=11 // pred_check
        %p168 = pneg %p100
      $region22: #{residual_separable_block.1} parent=11 // pred_check_branch
        %170 = sbr.rel (%p168) target = $region24
      $region23: #{residual_separable_block.1} parent=11 // pred_region
        _
      $region24: #{residual_separable_block.1} parent=11 // pred_fallthru
        _
      // Predicated region
      $region25: #{residual_separable_block.1} parent=11 // pred_check
        %p171 = pneg %p121
      $region26: #{residual_separable_block.1} parent=11 // pred_check_branch
        %173 = sbr.rel (%p171) target = $region28
      $region27: #{residual_separable_block.1} parent=11 // pred_region
        _
      $region28: #{residual_separable_block.1} parent=11 // pred_fallthru
        _
    $region12: #{residual_separable_block.1} parent=5 // pred_fallthru
      _
    %p174 = scmp.lt.s32.totalorder %s11, 2
    // Predicated region
    $region29: #{residual_separable_block.1} parent=5 // pred_check
      %p175 = pneg %p174
    $region30: #{residual_separable_block.1} parent=5 // pred_check_branch
      %177 = sbr.rel (%p175) target = $region32
    $region31: #{residual_separable_block.1} parent=5 // pred_region
      // Predicated region
      $region33: #{residual_separable_block.1} parent=31 // pred_check
        %p178 = pneg %p31
      $region34: #{residual_separable_block.1} parent=31 // pred_check_branch
        %180 = sbr.rel (%p178) target = $region36
      $region35: #{residual_separable_block.1} parent=31 // pred_region
        %p181 = scmp.lt.s32.totalorder %s11, 1
        %s182 = scalar_select %p181, %s11, 1
        %s183 = smul.addr %s182, 16
        %s184 = smul.addr %s183, 8
        %s185 = scalar_lea.vmem %s0, %s184
      $region36: #{residual_separable_block.1} parent=31 // pred_fallthru
        _
    $region32: #{residual_separable_block.1} parent=5 // pred_fallthru
      _
    %p186 = scmp.le.s32.totalorder 1, %s11
    %p187 = scmp.lt.s32.totalorder %s11, 3
    %p188 = pnand %p186, %p187
    %p189 = pneg %p188
    // Predicated region
    $region37: #{residual_separable_block.1} parent=5 // pred_check
      _
    $region38: #{residual_separable_block.1} parent=5 // pred_check_branch
      %191 = sbr.rel (%p188) target = $region40
    $region39: #{residual_separable_block.1} parent=5 // pred_region
      %s192 = ssub.s32 %s11, 1
      %p193 = scmp.lt.s32.totalorder %s16, 1
      %s194 = scalar_select %p193, %s16, 1
      %s195 = smul.addr %s194, 16
      %s196 = smul.addr %s195, 8
      %s197 = scalar_lea.vmem %s0, %s196
      %p198 = pneg %p37
      %p199 = pneg %p34
      %p200 = pneg %p58
      %p201 = pneg %p55
      %p202 = pneg %p79
      %p203 = pneg %p76
      %p204 = pneg %p100
      %p205 = pneg %p97
      %p206 = pneg %p121
      %p207 = pneg %p118
      %p208 = pneg %p147
      %p209 = pneg %p144
      %p210 = scmp.lt.s32.totalorder %s16, 1
      %s211 = scalar_select %p210, %s16, 1
      %s212 = smul.addr %s211, 16
      %s213 = smul.addr %s212, 8
      %s214 = scalar_lea.vmem %s5, %s213
      %p215 = scmp.lt.s32.totalorder %s16, 1
      %s216 = scalar_select %p215, %s16, 1
      %s217 = smul.addr %s216, 16
      %s218 = smul.addr %s217, 8
      %s219 = scalar_lea.vmem %s0, %s218
      %p220 = scmp.lt.s32.totalorder %s16, 1
      %s221 = scalar_select %p220, %s16, 1
      %s222 = smul.addr %s221, 16
      %s223 = smul.addr %s222, 8
      %s224 = scalar_lea.vmem %s5, %s223
      %v226 = vld [vmem:[%s219] sm:$0xff]
      %v227 = vld [vmem:[%s219 + $0x8] sm:$0xff]
      %v228 = vld [vmem:[%s219 + $0x10] sm:$0xff]
      %v229 = vld [vmem:[%s219 + $0x18] sm:$0xff]
      %v230 = vld [vmem:[%s219 + $0x20] sm:$0xff]
      %v231 = vld [vmem:[%s219 + $0x28] sm:$0xff]
      %v232 = vld [vmem:[%s219 + $0x30] sm:$0xff]
      %v233 = vld [vmem:[%s219 + $0x38] sm:$0xff]
      %v234 = vld [vmem:[%s219 + $0x40] sm:$0xff]
      %v235 = vld [vmem:[%s219 + $0x48] sm:$0xff]
      %v236 = vld [vmem:[%s219 + $0x50] sm:$0xff]
      %v237 = vld [vmem:[%s219 + $0x58] sm:$0xff]
      %v238 = vld [vmem:[%s219 + $0x60] sm:$0xff]
      %v239 = vld [vmem:[%s219 + $0x68] sm:$0xff]
      %v240 = vld [vmem:[%s219 + $0x70] sm:$0xff]
      %v241 = vld [vmem:[%s219 + $0x78] sm:$0xff]
      %v242 = vld [vmem:[%s4] ss:$4 sm:$0x3]
      %vm243 = vcmp.eq.s32.totalorder %v242, 1
      %s244 = scalar_lea.vmem %s4, 1
      %v245 = vld [vmem:[%s244] ss:$4 sm:$0x3]
      %vm246 = vcmp.eq.s32.totalorder %v245, 1
      %s247 = scalar_lea.vmem %s4, 2
      %v248 = vld [vmem:[%s247] ss:$4 sm:$0x3]
      %vm249 = vcmp.eq.s32.totalorder %v248, 1
      %s250 = scalar_lea.vmem %s4, 3
      %v251 = vld [vmem:[%s250] ss:$4 sm:$0x3]
      %vm252 = vcmp.eq.s32.totalorder %v251, 1
      %253 = vrot.lane.b32.xlu0 %v226, 16
      %v254 = vpop.permute.xlu0 %253
      %255 = vrot.lane.b32.xlu0 %v228, 16
      %v256 = vpop.permute.xlu0 %255
      %257 = vrot.lane.b32.xlu0 %v230, 16
      %v258 = vpop.permute.xlu0 %257
      %259 = vrot.lane.b32.xlu0 %v232, 16
      %v260 = vpop.permute.xlu0 %259
      %261 = vrot.lane.b32.xlu0 %v234, 16
      %v262 = vpop.permute.xlu0 %261
      %263 = vrot.lane.b32.xlu0 %v236, 16
      %v264 = vpop.permute.xlu0 %263
      %265 = vrot.lane.b32.xlu0 %v238, 16
      %v266 = vpop.permute.xlu0 %265
      %267 = vrot.lane.b32.xlu0 %v240, 16
      %v268 = vpop.permute.xlu0 %267
      %269 = vrot.lane.b32.xlu0 %v227, 16
      %v270 = vpop.permute.xlu0 %269
      %271 = vrot.lane.b32.xlu0 %v229, 16
      %v272 = vpop.permute.xlu0 %271
      %273 = vrot.lane.b32.xlu0 %v231, 16
      %v274 = vpop.permute.xlu0 %273
      %275 = vrot.lane.b32.xlu0 %v233, 16
      %v276 = vpop.permute.xlu0 %275
      %277 = vrot.lane.b32.xlu0 %v235, 16
      %v278 = vpop.permute.xlu0 %277
      %279 = vrot.lane.b32.xlu0 %v237, 16
      %v280 = vpop.permute.xlu0 %279
      %281 = vrot.lane.b32.xlu0 %v239, 16
      %v282 = vpop.permute.xlu0 %281
      %283 = vrot.lane.b32.xlu0 %v241, 16
      %v284 = vpop.permute.xlu0 %283
      %v285 = vlaneseq
      %v286 = vand.u32 %v285, 127
      %vm287 = vcmp.lt.s32.totalorder %v286, 16
      %v288 = vsel %vm287, %v254, %v270
      %v289 = vsel %vm287, %v256, %v272
      %v290 = vsel %vm287, %v258, %v274
      %v291 = vsel %vm287, %v260, %v276
      %v292 = vsel %vm287, %v262, %v278
      %v293 = vsel %vm287, %v264, %v280
      %v294 = vsel %vm287, %v266, %v282
      %v295 = vsel %vm287, %v268, %v284
      %v296 = vsel %vm287, %v270, %v254
      %v297 = vsel %vm287, %v272, %v256
      %v298 = vsel %vm287, %v274, %v258
      %v299 = vsel %vm287, %v276, %v260
      %v300 = vsel %vm287, %v278, %v262
      %v301 = vsel %vm287, %v280, %v264
      %v302 = vsel %vm287, %v282, %v266
      %v303 = vsel %vm287, %v284, %v268
      %304 = vrot.lane.b32.xlu0 %v226, 112
      %v305 = vpop.permute.xlu0 %304
      %306 = vrot.lane.b32.xlu0 %v228, 112
      %v307 = vpop.permute.xlu0 %306
      %308 = vrot.lane.b32.xlu0 %v230, 112
      %v309 = vpop.permute.xlu0 %308
      %310 = vrot.lane.b32.xlu0 %v232, 112
      %v311 = vpop.permute.xlu0 %310
      %312 = vrot.lane.b32.xlu0 %v234, 112
      %v313 = vpop.permute.xlu0 %312
      %314 = vrot.lane.b32.xlu0 %v236, 112
      %v315 = vpop.permute.xlu0 %314
      %316 = vrot.lane.b32.xlu0 %v238, 112
      %v317 = vpop.permute.xlu0 %316
      %318 = vrot.lane.b32.xlu0 %v240, 112
      %v319 = vpop.permute.xlu0 %318
      %320 = vrot.lane.b32.xlu0 %v227, 112
      %v321 = vpop.permute.xlu0 %320
      %322 = vrot.lane.b32.xlu0 %v229, 112
      %v323 = vpop.permute.xlu0 %322
      %324 = vrot.lane.b32.xlu0 %v231, 112
      %v325 = vpop.permute.xlu0 %324
      %326 = vrot.lane.b32.xlu0 %v233, 112
      %v327 = vpop.permute.xlu0 %326
      %328 = vrot.lane.b32.xlu0 %v235, 112
      %v329 = vpop.permute.xlu0 %328
      %330 = vrot.lane.b32.xlu0 %v237, 112
      %v331 = vpop.permute.xlu0 %330
      %332 = vrot.lane.b32.xlu0 %v239, 112
      %v333 = vpop.permute.xlu0 %332
      %334 = vrot.lane.b32.xlu0 %v241, 112
      %v335 = vpop.permute.xlu0 %334
      %vm336 = vcmp.lt.s32.totalorder %v286, 112
      %v337 = vsel %vm336, %v305, %v321
      %v338 = vsel %vm336, %v307, %v323
      %v339 = vsel %vm336, %v309, %v325
      %v340 = vsel %vm336, %v311, %v327
      %v341 = vsel %vm336, %v313, %v329
      %v342 = vsel %vm336, %v315, %v331
      %v343 = vsel %vm336, %v317, %v333
      %v344 = vsel %vm336, %v319, %v335
      %v345 = vsel %vm336, %v321, %v305
      %v346 = vsel %vm336, %v323, %v307
      %v347 = vsel %vm336, %v325, %v309
      %v348 = vsel %vm336, %v327, %v311
      %v349 = vsel %vm336, %v329, %v313
      %v350 = vsel %vm336, %v331, %v315
      %v351 = vsel %vm336, %v333, %v317
      %v352 = vsel %vm336, %v335, %v319
      %v353 = vsel %vm243, 1, 0
      %v354 = vlaneseq
      %v355 = vshrl.u32 %v354, 7
      %v356 = vsub.s32 0, %v355
      %v357 = vrot.slane %v353, %v356
      %v358 = vlaneseq
      %v359 = vshrl.u32 %v358, 7
      %v360 = vsub.s32 1, %v359
      %v361 = vrot.slane %v353, %v360
      %vm362 = vcmp.eq.s32.totalorder %v357, 1
      %vm363 = vcmp.eq.s32.totalorder %v361, 1
      %v364 = vsel %vm362, %v337, %v296
      %v365 = vsel %vm363, %v345, %v288
      %v366 = vsel %vm362, %v338, %v297
      %v367 = vsel %vm363, %v346, %v289
      %v368 = vsel %vm362, %v339, %v298
      %v369 = vsel %vm363, %v347, %v290
      %v370 = vsel %vm362, %v340, %v299
      %v371 = vsel %vm363, %v348, %v291
      %v372 = vsel %vm362, %v341, %v300
      %v373 = vsel %vm363, %v349, %v292
      %v374 = vsel %vm362, %v342, %v301
      %v375 = vsel %vm363, %v350, %v293
      %v376 = vsel %vm362, %v343, %v302
      %v377 = vsel %vm363, %v351, %v294
      %v378 = vsel %vm362, %v344, %v303
      %v379 = vsel %vm363, %v352, %v295
      %v380 = vsel %vm246, 1, 0
      %v381 = vlaneseq
      %v382 = vshrl.u32 %v381, 7
      %v383 = vsub.s32 0, %v382
      %v384 = vrot.slane %v380, %v383
      %v385 = vlaneseq
      %v386 = vshrl.u32 %v385, 7
      %v387 = vsub.s32 1, %v386
      %v388 = vrot.slane %v380, %v387
      %vm389 = vcmp.eq.s32.totalorder %v384, 1
      %vm390 = vcmp.eq.s32.totalorder %v388, 1
      %v391 = vsel %vm389, %v296, %v337
      %v392 = vsel %vm390, %v288, %v345
      %v393 = vsel %vm389, %v297, %v338
      %v394 = vsel %vm390, %v289, %v346
      %v395 = vsel %vm389, %v298, %v339
      %v396 = vsel %vm390, %v290, %v347
      %v397 = vsel %vm389, %v299, %v340
      %v398 = vsel %vm390, %v291, %v348
      %v399 = vsel %vm389, %v300, %v341
      %v400 = vsel %vm390, %v292, %v349
      %v401 = vsel %vm389, %v301, %v342
      %v402 = vsel %vm390, %v293, %v350
      %v403 = vsel %vm389, %v302, %v343
      %v404 = vsel %vm390, %v294, %v351
      %v405 = vsel %vm389, %v303, %v344
      %v406 = vsel %vm390, %v295, %v352
      %407 = vrot.lane.b32.xlu0 %v364, 1
      %v408 = vpop.permute.xlu0 %407
      %409 = vrot.lane.b32.xlu0 %v366, 1
      %v410 = vpop.permute.xlu0 %409
      %411 = vrot.lane.b32.xlu0 %v368, 1
      %v412 = vpop.permute.xlu0 %411
      %413 = vrot.lane.b32.xlu0 %v370, 1
      %v414 = vpop.permute.xlu0 %413
      %415 = vrot.lane.b32.xlu0 %v372, 1
      %v416 = vpop.permute.xlu0 %415
      %417 = vrot.lane.b32.xlu0 %v374, 1
      %v418 = vpop.permute.xlu0 %417
      %419 = vrot.lane.b32.xlu0 %v376, 1
      %v420 = vpop.permute.xlu0 %419
      %421 = vrot.lane.b32.xlu0 %v378, 1
      %v422 = vpop.permute.xlu0 %421
      %423 = vrot.lane.b32.xlu0 %v365, 1
      %v424 = vpop.permute.xlu0 %423
      %425 = vrot.lane.b32.xlu0 %v367, 1
      %v426 = vpop.permute.xlu0 %425
      %427 = vrot.lane.b32.xlu0 %v369, 1
      %v428 = vpop.permute.xlu0 %427
      %429 = vrot.lane.b32.xlu0 %v371, 1
      %v430 = vpop.permute.xlu0 %429
      %431 = vrot.lane.b32.xlu0 %v373, 1
      %v432 = vpop.permute.xlu0 %431
      %433 = vrot.lane.b32.xlu0 %v375, 1
      %v434 = vpop.permute.xlu0 %433
      %435 = vrot.lane.b32.xlu0 %v377, 1
      %v436 = vpop.permute.xlu0 %435
      %437 = vrot.lane.b32.xlu0 %v379, 1
      %v438 = vpop.permute.xlu0 %437
      %vm439 = vcmp.lt.s32.totalorder %v286, 1
      %v440 = vsel %vm439, %v408, %v424
      %v441 = vsel %vm439, %v410, %v426
      %v442 = vsel %vm439, %v412, %v428
      %v443 = vsel %vm439, %v414, %v430
      %v444 = vsel %vm439, %v416, %v432
      %v445 = vsel %vm439, %v418, %v434
      %v446 = vsel %vm439, %v420, %v436
      %v447 = vsel %vm439, %v422, %v438
      %v448 = vsel %vm439, %v424, %v408
      %v449 = vsel %vm439, %v426, %v410
      %v450 = vsel %vm439, %v428, %v412
      %v451 = vsel %vm439, %v430, %v414
      %v452 = vsel %vm439, %v432, %v416
      %v453 = vsel %vm439, %v434, %v418
      %v454 = vsel %vm439, %v436, %v420
      %v455 = vsel %vm439, %v438, %v422
      %456 = vrot.lane.b32.xlu0 %v364, 127
      %v457 = vpop.permute.xlu0 %456
      %458 = vrot.lane.b32.xlu0 %v366, 127
      %v459 = vpop.permute.xlu0 %458
      %460 = vrot.lane.b32.xlu0 %v368, 127
      %v461 = vpop.permute.xlu0 %460
      %462 = vrot.lane.b32.xlu0 %v370, 127
      %v463 = vpop.permute.xlu0 %462
      %464 = vrot.lane.b32.xlu0 %v372, 127
      %v465 = vpop.permute.xlu0 %464
      %466 = vrot.lane.b32.xlu0 %v374, 127
      %v467 = vpop.permute.xlu0 %466
      %468 = vrot.lane.b32.xlu0 %v376, 127
      %v469 = vpop.permute.xlu0 %468
      %470 = vrot.lane.b32.xlu0 %v378, 127
      %v471 = vpop.permute.xlu0 %470
      %472 = vrot.lane.b32.xlu0 %v365, 127
      %v473 = vpop.permute.xlu0 %472
      %474 = vrot.lane.b32.xlu0 %v367, 127
      %v475 = vpop.permute.xlu0 %474
      %476 = vrot.lane.b32.xlu0 %v369, 127
      %v477 = vpop.permute.xlu0 %476
      %478 = vrot.lane.b32.xlu0 %v371, 127
      %v479 = vpop.permute.xlu0 %478
      %480 = vrot.lane.b32.xlu0 %v373, 127
      %v481 = vpop.permute.xlu0 %480
      %482 = vrot.lane.b32.xlu0 %v375, 127
      %v483 = vpop.permute.xlu0 %482
      %484 = vrot.lane.b32.xlu0 %v377, 127
      %v485 = vpop.permute.xlu0 %484
      %486 = vrot.lane.b32.xlu0 %v379, 127
      %v487 = vpop.permute.xlu0 %486
      %vm488 = vcmp.lt.s32.totalorder %v286, 127
      %v489 = vsel %vm488, %v457, %v473
      %v490 = vsel %vm488, %v459, %v475
      %v491 = vsel %vm488, %v461, %v477
      %v492 = vsel %vm488, %v463, %v479
      %v493 = vsel %vm488, %v465, %v481
      %v494 = vsel %vm488, %v467, %v483
      %v495 = vsel %vm488, %v469, %v485
      %v496 = vsel %vm488, %v471, %v487
      %v497 = vsel %vm488, %v473, %v457
      %v498 = vsel %vm488, %v475, %v459
      %v499 = vsel %vm488, %v477, %v461
      %v500 = vsel %vm488, %v479, %v463
      %v501 = vsel %vm488, %v481, %v465
      %v502 = vsel %vm488, %v483, %v467
      %v503 = vsel %vm488, %v485, %v469
      %v504 = vsel %vm488, %v487, %v471
      %v505 = vsel %vm249, 1, 0
      %v506 = vlaneseq
      %v507 = vshrl.u32 %v506, 7
      %v508 = vsub.s32 0, %v507
      %v509 = vrot.slane %v505, %v508
      %v510 = vlaneseq
      %v511 = vshrl.u32 %v510, 7
      %v512 = vsub.s32 1, %v511
      %v513 = vrot.slane %v505, %v512
      %vm514 = vcmp.eq.s32.totalorder %v509, 1
      %vm515 = vcmp.eq.s32.totalorder %v513, 1
      %v516 = vsel %vm514, %v489, %v448
      %v517 = vsel %vm515, %v497, %v440
      %v518 = vsel %vm514, %v490, %v449
      %v519 = vsel %vm515, %v498, %v441
      %v520 = vsel %vm514, %v491, %v450
      %v521 = vsel %vm515, %v499, %v442
      %v522 = vsel %vm514, %v492, %v451
      %v523 = vsel %vm515, %v500, %v443
      %v524 = vsel %vm514, %v493, %v452
      %v525 = vsel %vm515, %v501, %v444
      %v526 = vsel %vm514, %v494, %v453
      %v527 = vsel %vm515, %v502, %v445
      %v528 = vsel %vm514, %v495, %v454
      %v529 = vsel %vm515, %v503, %v446
      %v530 = vsel %vm514, %v496, %v455
      %v531 = vsel %vm515, %v504, %v447
      %v532 = vsel %vm252, 1, 0
      %v533 = vlaneseq
      %v534 = vshrl.u32 %v533, 7
      %v535 = vsub.s32 0, %v534
      %v536 = vrot.slane %v532, %v535
      %v537 = vlaneseq
      %v538 = vshrl.u32 %v537, 7
      %v539 = vsub.s32 1, %v538
      %v540 = vrot.slane %v532, %v539
      %vm541 = vcmp.eq.s32.totalorder %v536, 1
      %vm542 = vcmp.eq.s32.totalorder %v540, 1
      %v543 = vsel %vm541, %v448, %v489
      %v544 = vsel %vm542, %v440, %v497
      %v545 = vsel %vm541, %v449, %v490
      %v546 = vsel %vm542, %v441, %v498
      %v547 = vsel %vm541, %v450, %v491
      %v548 = vsel %vm542, %v442, %v499
      %v549 = vsel %vm541, %v451, %v492
      %v550 = vsel %vm542, %v443, %v500
      %v551 = vsel %vm541, %v452, %v493
      %v552 = vsel %vm542, %v444, %v501
      %v553 = vsel %vm541, %v453, %v494
      %v554 = vsel %vm542, %v445, %v502
      %v555 = vsel %vm541, %v454, %v495
      %v556 = vsel %vm542, %v446, %v503
      %v557 = vsel %vm541, %v455, %v496
      %v558 = vsel %vm542, %v447, %v504
      %v559 = vpack.c.bf16 %v518, %v516
      %v560 = vpack.c.bf16 %v519, %v517
      %v561 = vpack.c.bf16 %v522, %v520
      %v562 = vpack.c.bf16 %v523, %v521
      %v563 = vpack.c.bf16 %v526, %v524
      %v564 = vpack.c.bf16 %v527, %v525
      %v565 = vpack.c.bf16 %v530, %v528
      %v566 = vpack.c.bf16 %v531, %v529
      %v567 = vpack.c.bf16 %v366, %v364
      %v568 = vpack.c.bf16 %v367, %v365
      %v569 = vpack.c.bf16 %v370, %v368
      %v570 = vpack.c.bf16 %v371, %v369
      %v571 = vpack.c.bf16 %v374, %v372
      %v572 = vpack.c.bf16 %v375, %v373
      %v573 = vpack.c.bf16 %v378, %v376
      %v574 = vpack.c.bf16 %v379, %v377
      %v575 = vpack.c.bf16 %v545, %v543
      %v576 = vpack.c.bf16 %v546, %v544
      %v577 = vpack.c.bf16 %v549, %v547
      %v578 = vpack.c.bf16 %v550, %v548
      %v579 = vpack.c.bf16 %v553, %v551
      %v580 = vpack.c.bf16 %v554, %v552
      %v581 = vpack.c.bf16 %v557, %v555
      %v582 = vpack.c.bf16 %v558, %v556
      %583 = vrot.lane.b32.xlu0 %v226, 1
      %v584 = vpop.permute.xlu0 %583
      %585 = vrot.lane.b32.xlu0 %v228, 1
      %v586 = vpop.permute.xlu0 %585
      %587 = vrot.lane.b32.xlu0 %v230, 1
      %v588 = vpop.permute.xlu0 %587
      %589 = vrot.lane.b32.xlu0 %v232, 1
      %v590 = vpop.permute.xlu0 %589
      %591 = vrot.lane.b32.xlu0 %v234, 1
      %v592 = vpop.permute.xlu0 %591
      %593 = vrot.lane.b32.xlu0 %v236, 1
      %v594 = vpop.permute.xlu0 %593
      %595 = vrot.lane.b32.xlu0 %v238, 1
      %v596 = vpop.permute.xlu0 %595
      %597 = vrot.lane.b32.xlu0 %v240, 1
      %v598 = vpop.permute.xlu0 %597
      %599 = vrot.lane.b32.xlu0 %v227, 1
      %v600 = vpop.permute.xlu0 %599
      %601 = vrot.lane.b32.xlu0 %v229, 1
      %v602 = vpop.permute.xlu0 %601
      %603 = vrot.lane.b32.xlu0 %v231, 1
      %v604 = vpop.permute.xlu0 %603
      %605 = vrot.lane.b32.xlu0 %v233, 1
      %v606 = vpop.permute.xlu0 %605
      %607 = vrot.lane.b32.xlu0 %v235, 1
      %v608 = vpop.permute.xlu0 %607
      %609 = vrot.lane.b32.xlu0 %v237, 1
      %v610 = vpop.permute.xlu0 %609
      %611 = vrot.lane.b32.xlu0 %v239, 1
      %v612 = vpop.permute.xlu0 %611
      %613 = vrot.lane.b32.xlu0 %v241, 1
      %v614 = vpop.permute.xlu0 %613
      %v615 = vsel %vm439, %v584, %v600
      %v616 = vsel %vm439, %v586, %v602
      %v617 = vsel %vm439, %v588, %v604
      %v618 = vsel %vm439, %v590, %v606
      %v619 = vsel %vm439, %v592, %v608
      %v620 = vsel %vm439, %v594, %v610
      %v621 = vsel %vm439, %v596, %v612
      %v622 = vsel %vm439, %v598, %v614
      %v623 = vsel %vm439, %v600, %v584
      %v624 = vsel %vm439, %v602, %v586
      %v625 = vsel %vm439, %v604, %v588
      %v626 = vsel %vm439, %v606, %v590
      %v627 = vsel %vm439, %v608, %v592
      %v628 = vsel %vm439, %v610, %v594
      %v629 = vsel %vm439, %v612, %v596
      %v630 = vsel %vm439, %v614, %v598
      %631 = vrot.lane.b32.xlu0 %v226, 127
      %v632 = vpop.permute.xlu0 %631
      %633 = vrot.lane.b32.xlu0 %v228, 127
      %v634 = vpop.permute.xlu0 %633
      %635 = vrot.lane.b32.xlu0 %v230, 127
      %v636 = vpop.permute.xlu0 %635
      %637 = vrot.lane.b32.xlu0 %v232, 127
      %v638 = vpop.permute.xlu0 %637
      %639 = vrot.lane.b32.xlu0 %v234, 127
      %v640 = vpop.permute.xlu0 %639
      %641 = vrot.lane.b32.xlu0 %v236, 127
      %v642 = vpop.permute.xlu0 %641
      %643 = vrot.lane.b32.xlu0 %v238, 127
      %v644 = vpop.permute.xlu0 %643
      %645 = vrot.lane.b32.xlu0 %v240, 127
      %v646 = vpop.permute.xlu0 %645
      %647 = vrot.lane.b32.xlu0 %v227, 127
      %v648 = vpop.permute.xlu0 %647
      %649 = vrot.lane.b32.xlu0 %v229, 127
      %v650 = vpop.permute.xlu0 %649
      %651 = vrot.lane.b32.xlu0 %v231, 127
      %v652 = vpop.permute.xlu0 %651
      %653 = vrot.lane.b32.xlu0 %v233, 127
      %v654 = vpop.permute.xlu0 %653
      %655 = vrot.lane.b32.xlu0 %v235, 127
      %v656 = vpop.permute.xlu0 %655
      %657 = vrot.lane.b32.xlu0 %v237, 127
      %v658 = vpop.permute.xlu0 %657
      %659 = vrot.lane.b32.xlu0 %v239, 127
      %v660 = vpop.permute.xlu0 %659
      %661 = vrot.lane.b32.xlu0 %v241, 127
      %v662 = vpop.permute.xlu0 %661
      %v663 = vsel %vm488, %v632, %v648
      %v664 = vsel %vm488, %v634, %v650
      %v665 = vsel %vm488, %v636, %v652
      %v666 = vsel %vm488, %v638, %v654
      %v667 = vsel %vm488, %v640, %v656
      %v668 = vsel %vm488, %v642, %v658
      %v669 = vsel %vm488, %v644, %v660
      %v670 = vsel %vm488, %v646, %v662
      %v671 = vsel %vm488, %v648, %v632
      %v672 = vsel %vm488, %v650, %v634
      %v673 = vsel %vm488, %v652, %v636
      %v674 = vsel %vm488, %v654, %v638
      %v675 = vsel %vm488, %v656, %v640
      %v676 = vsel %vm488, %v658, %v642
      %v677 = vsel %vm488, %v660, %v644
      %v678 = vsel %vm488, %v662, %v646
      %v679 = vsel %vm514, %v663, %v623
      %v680 = vsel %vm515, %v671, %v615
      %v681 = vsel %vm514, %v664, %v624
      %v682 = vsel %vm515, %v672, %v616
      %v683 = vsel %vm514, %v665, %v625
      %v684 = vsel %vm515, %v673, %v617
      %v685 = vsel %vm514, %v666, %v626
      %v686 = vsel %vm515, %v674, %v618
      %v687 = vsel %vm514, %v667, %v627
      %v688 = vsel %vm515, %v675, %v619
      %v689 = vsel %vm514, %v668, %v628
      %v690 = vsel %vm515, %v676, %v620
      %v691 = vsel %vm514, %v669, %v629
      %v692 = vsel %vm515, %v677, %v621
      %v693 = vsel %vm514, %v670, %v630
      %v694 = vsel %vm515, %v678, %v622
      %v695 = vsel %vm541, %v623, %v663
      %v696 = vsel %vm542, %v615, %v671
      %v697 = vsel %vm541, %v624, %v664
      %v698 = vsel %vm542, %v616, %v672
      %v699 = vsel %vm541, %v625, %v665
      %v700 = vsel %vm542, %v617, %v673
      %v701 = vsel %vm541, %v626, %v666
      %v702 = vsel %vm542, %v618, %v674
      %v703 = vsel %vm541, %v627, %v667
      %v704 = vsel %vm542, %v619, %v675
      %v705 = vsel %vm541, %v628, %v668
      %v706 = vsel %vm542, %v620, %v676
      %v707 = vsel %vm541, %v629, %v669
      %v708 = vsel %vm542, %v621, %v677
      %v709 = vsel %vm541, %v630, %v670
      %v710 = vsel %vm542, %v622, %v678
      %v711 = vpack.c.bf16 %v681, %v679
      %v712 = vpack.c.bf16 %v682, %v680
      %v713 = vpack.c.bf16 %v685, %v683
      %v714 = vpack.c.bf16 %v686, %v684
      %v715 = vpack.c.bf16 %v689, %v687
      %v716 = vpack.c.bf16 %v690, %v688
      %v717 = vpack.c.bf16 %v693, %v691
      %v718 = vpack.c.bf16 %v694, %v692
      %v719 = vpack.c.bf16 %v228, %v226
      %v720 = vpack.c.bf16 %v229, %v227
      %v721 = vpack.c.bf16 %v232, %v230
      %v722 = vpack.c.bf16 %v233, %v231
      %v723 = vpack.c.bf16 %v236, %v234
      %v724 = vpack.c.bf16 %v237, %v235
      %v725 = vpack.c.bf16 %v240, %v238
      %v726 = vpack.c.bf16 %v241, %v239
      %v727 = vpack.c.bf16 %v697, %v695
      %v728 = vpack.c.bf16 %v698, %v696
      %v729 = vpack.c.bf16 %v701, %v699
      %v730 = vpack.c.bf16 %v702, %v700
      %v731 = vpack.c.bf16 %v705, %v703
      %v732 = vpack.c.bf16 %v706, %v704
      %v733 = vpack.c.bf16 %v709, %v707
      %v734 = vpack.c.bf16 %v710, %v708
      %735 = vrot.lane.b32.xlu0 %v391, 1
      %v736 = vpop.permute.xlu0 %735
      %737 = vrot.lane.b32.xlu0 %v393, 1
      %v738 = vpop.permute.xlu0 %737
      %739 = vrot.lane.b32.xlu0 %v395, 1
      %v740 = vpop.permute.xlu0 %739
      %741 = vrot.lane.b32.xlu0 %v397, 1
      %v742 = vpop.permute.xlu0 %741
      %743 = vrot.lane.b32.xlu0 %v399, 1
      %v744 = vpop.permute.xlu0 %743
      %745 = vrot.lane.b32.xlu0 %v401, 1
      %v746 = vpop.permute.xlu0 %745
      %747 = vrot.lane.b32.xlu0 %v403, 1
      %v748 = vpop.permute.xlu0 %747
      %749 = vrot.lane.b32.xlu0 %v405, 1
      %v750 = vpop.permute.xlu0 %749
      %751 = vrot.lane.b32.xlu0 %v392, 1
      %v752 = vpop.permute.xlu0 %751
      %753 = vrot.lane.b32.xlu0 %v394, 1
      %v754 = vpop.permute.xlu0 %753
      %755 = vrot.lane.b32.xlu0 %v396, 1
      %v756 = vpop.permute.xlu0 %755
      %757 = vrot.lane.b32.xlu0 %v398, 1
      %v758 = vpop.permute.xlu0 %757
      %759 = vrot.lane.b32.xlu0 %v400, 1
      %v760 = vpop.permute.xlu0 %759
      %761 = vrot.lane.b32.xlu0 %v402, 1
      %v762 = vpop.permute.xlu0 %761
      %763 = vrot.lane.b32.xlu0 %v404, 1
      %v764 = vpop.permute.xlu0 %763
      %765 = vrot.lane.b32.xlu0 %v406, 1
      %v766 = vpop.permute.xlu0 %765
      %v767 = vsel %vm439, %v736, %v752
      %v768 = vsel %vm439, %v738, %v754
      %v769 = vsel %vm439, %v740, %v756
      %v770 = vsel %vm439, %v742, %v758
      %v771 = vsel %vm439, %v744, %v760
      %v772 = vsel %vm439, %v746, %v762
      %v773 = vsel %vm439, %v748, %v764
      %v774 = vsel %vm439, %v750, %v766
      %v775 = vsel %vm439, %v752, %v736
      %v776 = vsel %vm439, %v754, %v738
      %v777 = vsel %vm439, %v756, %v740
      %v778 = vsel %vm439, %v758, %v742
      %v779 = vsel %vm439, %v760, %v744
      %v780 = vsel %vm439, %v762, %v746
      %v781 = vsel %vm439, %v764, %v748
      %v782 = vsel %vm439, %v766, %v750
      %783 = vrot.lane.b32.xlu0 %v391, 127
      %v784 = vpop.permute.xlu0 %783
      %785 = vrot.lane.b32.xlu0 %v393, 127
      %v786 = vpop.permute.xlu0 %785
      %787 = vrot.lane.b32.xlu0 %v395, 127
      %v788 = vpop.permute.xlu0 %787
      %789 = vrot.lane.b32.xlu0 %v397, 127
      %v790 = vpop.permute.xlu0 %789
      %791 = vrot.lane.b32.xlu0 %v399, 127
      %v792 = vpop.permute.xlu0 %791
      %793 = vrot.lane.b32.xlu0 %v401, 127
      %v794 = vpop.permute.xlu0 %793
      %795 = vrot.lane.b32.xlu0 %v403, 127
      %v796 = vpop.permute.xlu0 %795
      %797 = vrot.lane.b32.xlu0 %v405, 127
      %v798 = vpop.permute.xlu0 %797
      %799 = vrot.lane.b32.xlu0 %v392, 127
      %v800 = vpop.permute.xlu0 %799
      %801 = vrot.lane.b32.xlu0 %v394, 127
      %v802 = vpop.permute.xlu0 %801
      %803 = vrot.lane.b32.xlu0 %v396, 127
      %v804 = vpop.permute.xlu0 %803
      %805 = vrot.lane.b32.xlu0 %v398, 127
      %v806 = vpop.permute.xlu0 %805
      %807 = vrot.lane.b32.xlu0 %v400, 127
      %v808 = vpop.permute.xlu0 %807
      %809 = vrot.lane.b32.xlu0 %v402, 127
      %v810 = vpop.permute.xlu0 %809
      %811 = vrot.lane.b32.xlu0 %v404, 127
      %v812 = vpop.permute.xlu0 %811
      %813 = vrot.lane.b32.xlu0 %v406, 127
      %v814 = vpop.permute.xlu0 %813
      %v815 = vsel %vm488, %v784, %v800
      %v816 = vsel %vm488, %v786, %v802
      %v817 = vsel %vm488, %v788, %v804
      %v818 = vsel %vm488, %v790, %v806
      %v819 = vsel %vm488, %v792, %v808
      %v820 = vsel %vm488, %v794, %v810
      %v821 = vsel %vm488, %v796, %v812
      %v822 = vsel %vm488, %v798, %v814
      %v823 = vsel %vm488, %v800, %v784
      %v824 = vsel %vm488, %v802, %v786
      %v825 = vsel %vm488, %v804, %v788
      %v826 = vsel %vm488, %v806, %v790
      %v827 = vsel %vm488, %v808, %v792
      %v828 = vsel %vm488, %v810, %v794
      %v829 = vsel %vm488, %v812, %v796
      %v830 = vsel %vm488, %v814, %v798
      %v831 = vsel %vm514, %v815, %v775
      %v832 = vsel %vm515, %v823, %v767
      %v833 = vsel %vm514, %v816, %v776
      %v834 = vsel %vm515, %v824, %v768
      %v835 = vsel %vm514, %v817, %v777
      %v836 = vsel %vm515, %v825, %v769
      %v837 = vsel %vm514, %v818, %v778
      %v838 = vsel %vm515, %v826, %v770
      %v839 = vsel %vm514, %v819, %v779
      %v840 = vsel %vm515, %v827, %v771
      %v841 = vsel %vm514, %v820, %v780
      %v842 = vsel %vm515, %v828, %v772
      %v843 = vsel %vm514, %v821, %v781
      %v844 = vsel %vm515, %v829, %v773
      %v845 = vsel %vm514, %v822, %v782
      %v846 = vsel %vm515, %v830, %v774
      %v847 = vsel %vm541, %v775, %v815
      %v848 = vsel %vm542, %v767, %v823
      %v849 = vsel %vm541, %v776, %v816
      %v850 = vsel %vm542, %v768, %v824
      %v851 = vsel %vm541, %v777, %v817
      %v852 = vsel %vm542, %v769, %v825
      %v853 = vsel %vm541, %v778, %v818
      %v854 = vsel %vm542, %v770, %v826
      %v855 = vsel %vm541, %v779, %v819
      %v856 = vsel %vm542, %v771, %v827
      %v857 = vsel %vm541, %v780, %v820
      %v858 = vsel %vm542, %v772, %v828
      %v859 = vsel %vm541, %v781, %v821
      %v860 = vsel %vm542, %v773, %v829
      %v861 = vsel %vm541, %v782, %v822
      %v862 = vsel %vm542, %v774, %v830
      %v863 = vpack.c.bf16 %v833, %v831
      %v864 = vpack.c.bf16 %v834, %v832
      %v865 = vpack.c.bf16 %v837, %v835
      %v866 = vpack.c.bf16 %v838, %v836
      %v867 = vpack.c.bf16 %v841, %v839
      %v868 = vpack.c.bf16 %v842, %v840
      %v869 = vpack.c.bf16 %v845, %v843
      %v870 = vpack.c.bf16 %v846, %v844
      %v871 = vpack.c.bf16 %v393, %v391
      %v872 = vpack.c.bf16 %v394, %v392
      %v873 = vpack.c.bf16 %v397, %v395
      %v874 = vpack.c.bf16 %v398, %v396
      %v875 = vpack.c.bf16 %v401, %v399
      %v876 = vpack.c.bf16 %v402, %v400
      %v877 = vpack.c.bf16 %v405, %v403
      %v878 = vpack.c.bf16 %v406, %v404
      %v879 = vpack.c.bf16 %v849, %v847
      %v880 = vpack.c.bf16 %v850, %v848
      %v881 = vpack.c.bf16 %v853, %v851
      %v882 = vpack.c.bf16 %v854, %v852
      %v883 = vpack.c.bf16 %v857, %v855
      %v884 = vpack.c.bf16 %v858, %v856
      %v885 = vpack.c.bf16 %v861, %v859
      %v886 = vpack.c.bf16 %v862, %v860
      %v887 = vld [vmem:[%s1] sm:$0xff]
      %v888 = vld [vmem:[%s1 + $0x8] sm:$0xff]
      %v889 = vld [vmem:[%s1 + $0x10] sm:$0xf]
      %v890 = vld [vmem:[%s1 + $0x14] sm:$0xff]
      %v891 = vld [vmem:[%s1 + $0x1c] sm:$0xff]
      %v892 = vld [vmem:[%s1 + $0x24] sm:$0xf]
      %v893 = vld [vmem:[%s1 + $0x28] sm:$0xff]
      %v894 = vld [vmem:[%s1 + $0x30] sm:$0xff]
      %v895 = vld [vmem:[%s1 + $0x38] sm:$0xf]
      %v896 = vld [vmem:[%s1 + $0x3c] sm:$0xff]
      %v897 = vld [vmem:[%s1 + $0x44] sm:$0xff]
      %v898 = vld [vmem:[%s1 + $0x4c] sm:$0xf]
      %v899 = vld [vmem:[%s1 + $0x50] sm:$0xff]
      %v900 = vld [vmem:[%s1 + $0x58] sm:$0xff]
      %v901 = vld [vmem:[%s1 + $0x60] sm:$0xf]
      %v902 = vld [vmem:[%s1 + $0x64] sm:$0xff]
      %v903 = vld [vmem:[%s1 + $0x6c] sm:$0xff]
      %v904 = vld [vmem:[%s1 + $0x74] sm:$0xf]
      %v905 = vld [vmem:[%s1 + $0x78] sm:$0xff]
      %v906 = vld [vmem:[%s1 + $0x80] sm:$0xff]
      %v907 = vld [vmem:[%s1 + $0x88] sm:$0xf]
      %v908 = vld [vmem:[%s1 + $0x8c] sm:$0xff]
      %v909 = vld [vmem:[%s1 + $0x94] sm:$0xff]
      %v910 = vld [vmem:[%s1 + $0x9c] sm:$0xf]
      %v935 = vunpack.c.l.b16 %v887
      %v936 = vunpack.c.h.b16 %v887
      %v937 = vunpack.c.l.b16 %v888
      %v938 = vunpack.c.h.b16 %v888
      %v939 = vunpack.c.l.b16 %v889
      %v940 = vunpack.c.l.b16 %v890
      %v941 = vunpack.c.h.b16 %v890
      %v942 = vunpack.c.l.b16 %v891
      %v943 = vunpack.c.h.b16 %v891
      %v944 = vunpack.c.l.b16 %v892
      %v945 = vunpack.c.l.b16 %v893
      %v946 = vunpack.c.h.b16 %v893
      %v947 = vunpack.c.l.b16 %v894
      %v948 = vunpack.c.h.b16 %v894
      %v949 = vunpack.c.l.b16 %v895
      %v950 = vunpack.c.l.b16 %v896
      %v951 = vunpack.c.h.b16 %v896
      %v952 = vunpack.c.l.b16 %v897
      %v953 = vunpack.c.h.b16 %v897
      %v954 = vunpack.c.l.b16 %v898
      %v955 = vunpack.c.l.b16 %v899
      %v956 = vunpack.c.h.b16 %v899
      %v957 = vunpack.c.l.b16 %v900
      %v958 = vunpack.c.h.b16 %v900
      %v959 = vunpack.c.l.b16 %v901
      %v960 = vunpack.c.l.b16 %v902
      %v961 = vunpack.c.h.b16 %v902
      %v962 = vunpack.c.l.b16 %v903
      %v963 = vunpack.c.h.b16 %v903
      %v964 = vunpack.c.l.b16 %v904
      %v965 = vunpack.c.l.b16 %v905
      %v966 = vunpack.c.h.b16 %v905
      %v967 = vunpack.c.l.b16 %v906
      %v968 = vunpack.c.h.b16 %v906
      %v969 = vunpack.c.l.b16 %v907
      %v970 = vunpack.c.l.b16 %v908
      %v971 = vunpack.c.h.b16 %v908
      %v972 = vunpack.c.l.b16 %v909
      %v973 = vunpack.c.h.b16 %v909
      %v974 = vunpack.c.l.b16 %v910
      %v975 = vpack.c.b16 %v940, %v935
      %v976 = vpack.c.b16 %v941, %v936
      %v977 = vpack.c.b16 %v942, %v937
      %v978 = vpack.c.b16 %v943, %v938
      %v979 = vpack.c.b16 %v944, %v939
      %v980 = vpack.c.b16 %v950, %v945
      %v981 = vpack.c.b16 %v951, %v946
      %v982 = vpack.c.b16 %v952, %v947
      %v983 = vpack.c.b16 %v953, %v948
      %v984 = vpack.c.b16 %v954, %v949
      %v985 = vpack.c.b16 %v960, %v955
      %v986 = vpack.c.b16 %v961, %v956
      %v987 = vpack.c.b16 %v962, %v957
      %v988 = vpack.c.b16 %v963, %v958
      %v989 = vpack.c.b16 %v964, %v959
      %v990 = vpack.c.b16 %v970, %v965
      %v991 = vpack.c.b16 %v971, %v966
      %v992 = vpack.c.b16 %v972, %v967
      %v993 = vpack.c.b16 %v973, %v968
      %v994 = vpack.c.b16 %v974, %v969
      %vm1011 = vcmask 523264
      %v1013 = vsel %vm1011, %v979, 0
      %v1016 = vsel %vm1011, %v984, 0
      %v1019 = vsel %vm1011, %v989, 0
      %v1022 = vsel %vm1011, %v994, 0
      %1024 = vmatprep.subr.bf16.mxu0 %v574
      %1025 = vmatpush1.bf16.msra.mxu0 %v573
      %1026 = vmatprep.subr.bf16.mxu0 %v572
      %1027 = vmatpush1.bf16.msra.mxu0 %v571
      %1028 = vmatprep.subr.bf16.mxu0 %v570
      %1029 = vmatpush1.bf16.msra.mxu0 %v569
      %1030 = vmatprep.subr.bf16.mxu0 %v568
      %1031 = vmatpush1.bf16.msra.mxu0 %v567
      %1032 = vmatprep.subr.bf16.mxu0 %v566
      %1033 = vmatpush1.bf16.msra.mxu0 %v565
      %1034 = vmatprep.subr.bf16.mxu0 %v564
      %1035 = vmatpush1.bf16.msra.mxu0 %v563
      %1036 = vmatprep.subr.bf16.mxu0 %v562
      %1037 = vmatpush1.bf16.msra.mxu0 %v561
      %1038 = vmatprep.subr.bf16.mxu0 %v560
      %1039 = vmatpush1.bf16.msra.mxu0 %v559
      %1040 = vmatprep.subr.bf16.mxu0 %v718
      %1041 = vmatpush2.bf16.msra.mxu0 %v717
      %1042 = vmatprep.subr.bf16.mxu0 %v716
      %1043 = vmatpush2.bf16.msra.mxu0 %v715
      %1044 = vmatprep.subr.bf16.mxu0 %v714
      %1045 = vmatpush2.bf16.msra.mxu0 %v713
      %1046 = vmatprep.subr.bf16.mxu0 %v712
      %1047 = vmatpush2.bf16.msra.mxu0 %v711
      %1048 = vmatprep.subr.bf16.mxu0 %v582
      %1049 = vmatpush2.bf16.msra.mxu0 %v581
      %1050 = vmatprep.subr.bf16.mxu0 %v580
      %1051 = vmatpush2.bf16.msra.mxu0 %v579
      %1052 = vmatprep.subr.bf16.mxu0 %v578
      %1053 = vmatpush2.bf16.msra.mxu0 %v577
      %1054 = vmatprep.subr.bf16.mxu0 %v576
      %1055 = vmatpush2.bf16.msra.mxu0 %v575
      %1056 = vmatprep.mubr.bf16.mxu0 %v976
      %1057 = vmatmul.mubr.bf16.gmra.mxu0 %v975
      %v1058 = vpop.f32.mrf.mxu0
      %v1059 = vadd.f32 0.0, %v1058
      %v1060 = vpop.f32.mrf.mxu0
      %v1061 = vadd.f32 0.0, %v1060
      %v1062 = vpop.f32.mrf.mxu0
      %v1063 = vadd.f32 0.0, %v1062
      %v1064 = vpop.f32.mrf.mxu0
      %v1065 = vadd.f32 0.0, %v1064
      %1066 = vmatprep.mubr.bf16.mxu0 %v981
      %1067 = vmatmul.mubr.bf16.gmra.mxu0 %v980
      %v1068 = vpop.f32.mrf.mxu0
      %v1069 = vadd.f32 0.0, %v1068
      %v1070 = vpop.f32.mrf.mxu0
      %v1071 = vadd.f32 0.0, %v1070
      %v1072 = vpop.f32.mrf.mxu0
      %v1073 = vadd.f32 0.0, %v1072
      %v1074 = vpop.f32.mrf.mxu0
      %v1075 = vadd.f32 0.0, %v1074
      %1076 = vmatprep.mubr.bf16.mxu0 %v986
      %1077 = vmatmul.mubr.bf16.gmra.mxu0 %v985
      %v1078 = vpop.f32.mrf.mxu0
      %v1079 = vadd.f32 0.0, %v1078
      %v1080 = vpop.f32.mrf.mxu0
      %v1081 = vadd.f32 0.0, %v1080
      %v1082 = vpop.f32.mrf.mxu0
      %v1083 = vadd.f32 0.0, %v1082
      %v1084 = vpop.f32.mrf.mxu0
      %v1085 = vadd.f32 0.0, %v1084
      %1086 = vmatprep.mubr.bf16.mxu0 %v991
      %1087 = vmatmul.mubr.bf16.gmra.mxu0 %v990
      %v1088 = vpop.f32.mrf.mxu0
      %v1089 = vadd.f32 0.0, %v1088
      %v1090 = vpop.f32.mrf.mxu0
      %v1091 = vadd.f32 0.0, %v1090
      %v1092 = vpop.f32.mrf.mxu0
      %v1093 = vadd.f32 0.0, %v1092
      %v1094 = vpop.f32.mrf.mxu0
      %v1095 = vadd.f32 0.0, %v1094
      %1096 = vdwg.mxu0
      %1097 = vmatprep.subr.bf16.mxu0 %v734
      %1098 = vmatpush1.bf16.msra.mxu0 %v733
      %1099 = vmatprep.subr.bf16.mxu0 %v732
      %1100 = vmatpush1.bf16.msra.mxu0 %v731
      %1101 = vmatprep.subr.bf16.mxu0 %v730
      %1102 = vmatpush1.bf16.msra.mxu0 %v729
      %1103 = vmatprep.subr.bf16.mxu0 %v728
      %1104 = vmatpush1.bf16.msra.mxu0 %v727
      %1105 = vmatprep.subr.bf16.mxu0 %v726
      %1106 = vmatpush1.bf16.msra.mxu0 %v725
      %1107 = vmatprep.subr.bf16.mxu0 %v724
      %1108 = vmatpush1.bf16.msra.mxu0 %v723
      %1109 = vmatprep.subr.bf16.mxu0 %v722
      %1110 = vmatpush1.bf16.msra.mxu0 %v721
      %1111 = vmatprep.subr.bf16.mxu0 %v720
      %1112 = vmatpush1.bf16.msra.mxu0 %v719
      %1113 = vmatprep.subr.bf16.mxu0 %v878
      %1114 = vmatpush2.bf16.msra.mxu0 %v877
      %1115 = vmatprep.subr.bf16.mxu0 %v876
      %1116 = vmatpush2.bf16.msra.mxu0 %v875
      %1117 = vmatprep.subr.bf16.mxu0 %v874
      %1118 = vmatpush2.bf16.msra.mxu0 %v873
      %1119 = vmatprep.subr.bf16.mxu0 %v872
      %1120 = vmatpush2.bf16.msra.mxu0 %v871
      %1121 = vmatprep.subr.bf16.mxu0 %v870
      %1122 = vmatpush2.bf16.msra.mxu0 %v869
      %1123 = vmatprep.subr.bf16.mxu0 %v868
      %1124 = vmatpush2.bf16.msra.mxu0 %v867
      %1125 = vmatprep.subr.bf16.mxu0 %v866
      %1126 = vmatpush2.bf16.msra.mxu0 %v865
      %1127 = vmatprep.subr.bf16.mxu0 %v864
      %1128 = vmatpush2.bf16.msra.mxu0 %v863
      %1129 = vmatprep.mubr.bf16.mxu0 %v978
      %1130 = vmatmul.mubr.bf16.gmra.mxu0 %v977
      %v1131 = vpop.f32.mrf.mxu0
      %v1132 = vadd.f32 %v1059, %v1131
      %v1133 = vpop.f32.mrf.mxu0
      %v1134 = vadd.f32 %v1061, %v1133
      %v1135 = vpop.f32.mrf.mxu0
      %v1136 = vadd.f32 %v1063, %v1135
      %v1137 = vpop.f32.mrf.mxu0
      %v1138 = vadd.f32 %v1065, %v1137
      %1139 = vmatprep.mubr.bf16.mxu0 %v983
      %1140 = vmatmul.mubr.bf16.gmra.mxu0 %v982
      %v1141 = vpop.f32.mrf.mxu0
      %v1142 = vadd.f32 %v1069, %v1141
      %v1143 = vpop.f32.mrf.mxu0
      %v1144 = vadd.f32 %v1071, %v1143
      %v1145 = vpop.f32.mrf.mxu0
      %v1146 = vadd.f32 %v1073, %v1145
      %v1147 = vpop.f32.mrf.mxu0
      %v1148 = vadd.f32 %v1075, %v1147
      %1149 = vmatprep.mubr.bf16.mxu0 %v988
      %1150 = vmatmul.mubr.bf16.gmra.mxu0 %v987
      %v1151 = vpop.f32.mrf.mxu0
      %v1152 = vadd.f32 %v1079, %v1151
      %v1153 = vpop.f32.mrf.mxu0
      %v1154 = vadd.f32 %v1081, %v1153
      %v1155 = vpop.f32.mrf.mxu0
      %v1156 = vadd.f32 %v1083, %v1155
      %v1157 = vpop.f32.mrf.mxu0
      %v1158 = vadd.f32 %v1085, %v1157
      %1159 = vmatprep.mubr.bf16.mxu0 %v993
      %1160 = vmatmul.mubr.bf16.gmra.mxu0 %v992
      %v1161 = vpop.f32.mrf.mxu0
      %v1162 = vadd.f32 %v1089, %v1161
      %v1163 = vpop.f32.mrf.mxu0
      %v1164 = vadd.f32 %v1091, %v1163
      %v1165 = vpop.f32.mrf.mxu0
      %v1166 = vadd.f32 %v1093, %v1165
      %v1167 = vpop.f32.mrf.mxu0
      %v1168 = vadd.f32 %v1095, %v1167
      %1169 = vdwg.mxu0
      %1170 = vmatprep.subr.bf16.mxu0 0
      %1171 = vmatpush1.bf16.msra.mxu0 0
      %1172 = vmatprep.subr.bf16.mxu0 0
      %1173 = vmatpush1.bf16.msra.mxu0 0
      %1174 = vmatprep.subr.bf16.mxu0 0
      %1175 = vmatpush1.bf16.msra.mxu0 0
      %1176 = vmatprep.subr.bf16.mxu0 0
      %1177 = vmatpush1.bf16.msra.mxu0 0
      %1178 = vmatprep.subr.bf16.mxu0 %v886
      %1179 = vmatpush1.bf16.msra.mxu0 %v885
      %1180 = vmatprep.subr.bf16.mxu0 %v884
      %1181 = vmatpush1.bf16.msra.mxu0 %v883
      %1182 = vmatprep.subr.bf16.mxu0 %v882
      %1183 = vmatpush1.bf16.msra.mxu0 %v881
      %1184 = vmatprep.subr.bf16.mxu0 %v880
      %1185 = vmatpush1.bf16.msra.mxu0 %v879
      %1186 = vmatprep.subr.bf16.mxu0 0
      %1187 = vmatpush2.bf16.msra.mxu0 0
      %1188 = vmatprep.subr.bf16.mxu0 0
      %1189 = vmatpush2.bf16.msra.mxu0 0
      %1190 = vmatprep.subr.bf16.mxu0 0
      %1191 = vmatpush2.bf16.msra.mxu0 0
      %1192 = vmatprep.subr.bf16.mxu0 0
      %1193 = vmatpush2.bf16.msra.mxu0 0
      %1194 = vmatprep.subr.bf16.mxu0 0
      %1195 = vmatpush2.bf16.msra.mxu0 0
      %1196 = vmatprep.subr.bf16.mxu0 0
      %1197 = vmatpush2.bf16.msra.mxu0 0
      %1198 = vmatprep.subr.bf16.mxu0 0
      %1199 = vmatpush2.bf16.msra.mxu0 0
      %1200 = vmatprep.subr.bf16.mxu0 0
      %1201 = vmatpush2.bf16.msra.mxu0 0
      %1202 = vmatprep.mubr.bf16.mxu0 0
      %1203 = vmatmul.mubr.bf16.gmra.mxu0 %v1013
      %v1204 = vpop.f32.mrf.mxu0
      %v1205 = vadd.f32 %v1132, %v1204
      %v1206 = vpop.f32.mrf.mxu0
      %v1207 = vadd.f32 %v1134, %v1206
      %v1208 = vpop.f32.mrf.mxu0
      %v1209 = vadd.f32 %v1136, %v1208
      %v1210 = vpop.f32.mrf.mxu0
      %v1211 = vadd.f32 %v1138, %v1210
      %1212 = vmatprep.mubr.bf16.mxu0 0
      %1213 = vmatmul.mubr.bf16.gmra.mxu0 %v1016
      %v1214 = vpop.f32.mrf.mxu0
      %v1215 = vadd.f32 %v1142, %v1214
      %v1216 = vpop.f32.mrf.mxu0
      %v1217 = vadd.f32 %v1144, %v1216
      %v1218 = vpop.f32.mrf.mxu0
      %v1219 = vadd.f32 %v1146, %v1218
      %v1220 = vpop.f32.mrf.mxu0
      %v1221 = vadd.f32 %v1148, %v1220
      %1222 = vmatprep.mubr.bf16.mxu0 0
      %1223 = vmatmul.mubr.bf16.gmra.mxu0 %v1019
      %v1224 = vpop.f32.mrf.mxu0
      %v1225 = vadd.f32 %v1152, %v1224
      %v1226 = vpop.f32.mrf.mxu0
      %v1227 = vadd.f32 %v1154, %v1226
      %v1228 = vpop.f32.mrf.mxu0
      %v1229 = vadd.f32 %v1156, %v1228
      %v1230 = vpop.f32.mrf.mxu0
      %v1231 = vadd.f32 %v1158, %v1230
      %1232 = vmatprep.mubr.bf16.mxu0 0
      %1233 = vmatmul.mubr.bf16.gmra.mxu0 %v1022
      %v1234 = vpop.f32.mrf.mxu0
      %v1235 = vadd.f32 %v1162, %v1234
      %v1236 = vpop.f32.mrf.mxu0
      %v1237 = vadd.f32 %v1164, %v1236
      %v1238 = vpop.f32.mrf.mxu0
      %v1239 = vadd.f32 %v1166, %v1238
      %v1240 = vpop.f32.mrf.mxu0
      %v1241 = vadd.f32 %v1168, %v1240
      %1242 = vdwg.mxu0
      %v1243 = vld [vmem:[%s3] sm:$0xff]
      %v1244 = vld [vmem:[%s3 + $0x8] sm:$0xff]
      %v1245 = vld [vmem:[%s3 + $0x10] sm:$0xff]
      %v1246 = vld [vmem:[%s3 + $0x18] sm:$0xff]
      %v1247 = vld [vmem:[%s3 + $0x20] sm:$0xff]
      %v1248 = vld [vmem:[%s3 + $0x28] sm:$0xff]
      %v1249 = vld [vmem:[%s3 + $0x30] sm:$0xff]
      %v1250 = vld [vmem:[%s3 + $0x38] sm:$0xff]
      %v1251 = vadd.f32 %v1205, %v1207
      %1252 = vadd.xlane.f32.xlu0 %v1251
      %v1253 = vpop.xlane.xlu0 %1252
      %v1254 = vadd.f32 %v1209, %v1211
      %1255 = vadd.xlane.f32.xlu0 %v1254
      %v1256 = vpop.xlane.xlu0 %1255
      %v1257 = vadd.f32 %v1215, %v1217
      %1258 = vadd.xlane.f32.xlu0 %v1257
      %v1259 = vpop.xlane.xlu0 %1258
      %v1260 = vadd.f32 %v1219, %v1221
      %1261 = vadd.xlane.f32.xlu0 %v1260
      %v1262 = vpop.xlane.xlu0 %1261
      %v1263 = vadd.f32 %v1225, %v1227
      %1264 = vadd.xlane.f32.xlu0 %v1263
      %v1265 = vpop.xlane.xlu0 %1264
      %v1266 = vadd.f32 %v1229, %v1231
      %1267 = vadd.xlane.f32.xlu0 %v1266
      %v1268 = vpop.xlane.xlu0 %1267
      %v1269 = vadd.f32 %v1235, %v1237
      %1270 = vadd.xlane.f32.xlu0 %v1269
      %v1271 = vpop.xlane.xlu0 %1270
      %v1272 = vadd.f32 %v1239, %v1241
      %1273 = vadd.xlane.f32.xlu0 %v1272
      %v1274 = vpop.xlane.xlu0 %1273
      %v1275 = vmul.f32 %v1253, 0.00390625
      %v1276 = vmul.f32 %v1256, 0.00390625
      %v1277 = vmul.f32 %v1259, 0.00390625
      %v1278 = vmul.f32 %v1262, 0.00390625
      %v1279 = vmul.f32 %v1265, 0.00390625
      %v1280 = vmul.f32 %v1268, 0.00390625
      %v1281 = vmul.f32 %v1271, 0.00390625
      %v1282 = vmul.f32 %v1274, 0.00390625
      %v1283 = vmul.f32 %v1205, %v1205
      %v1284 = vmul.f32 %v1207, %v1207
      %v1285 = vmul.f32 %v1209, %v1209
      %v1286 = vmul.f32 %v1211, %v1211
      %v1287 = vmul.f32 %v1215, %v1215
      %v1288 = vmul.f32 %v1217, %v1217
      %v1289 = vmul.f32 %v1219, %v1219
      %v1290 = vmul.f32 %v1221, %v1221
      %v1291 = vmul.f32 %v1225, %v1225
      %v1292 = vmul.f32 %v1227, %v1227
      %v1293 = vmul.f32 %v1229, %v1229
      %v1294 = vmul.f32 %v1231, %v1231
      %v1295 = vmul.f32 %v1235, %v1235
      %v1296 = vmul.f32 %v1237, %v1237
      %v1297 = vmul.f32 %v1239, %v1239
      %v1298 = vmul.f32 %v1241, %v1241
      %v1299 = vadd.f32 %v1283, %v1284
      %1300 = vadd.xlane.f32.xlu0 %v1299
      %v1301 = vpop.xlane.xlu0 %1300
      %v1302 = vadd.f32 %v1285, %v1286
      %1303 = vadd.xlane.f32.xlu0 %v1302
      %v1304 = vpop.xlane.xlu0 %1303
      %v1305 = vadd.f32 %v1287, %v1288
      %1306 = vadd.xlane.f32.xlu0 %v1305
      %v1307 = vpop.xlane.xlu0 %1306
      %v1308 = vadd.f32 %v1289, %v1290
      %1309 = vadd.xlane.f32.xlu0 %v1308
      %v1310 = vpop.xlane.xlu0 %1309
      %v1311 = vadd.f32 %v1291, %v1292
      %1312 = vadd.xlane.f32.xlu0 %v1311
      %v1313 = vpop.xlane.xlu0 %1312
      %v1314 = vadd.f32 %v1293, %v1294
      %1315 = vadd.xlane.f32.xlu0 %v1314
      %v1316 = vpop.xlane.xlu0 %1315
      %v1317 = vadd.f32 %v1295, %v1296
      %1318 = vadd.xlane.f32.xlu0 %v1317
      %v1319 = vpop.xlane.xlu0 %1318
      %v1320 = vadd.f32 %v1297, %v1298
      %1321 = vadd.xlane.f32.xlu0 %v1320
      %v1322 = vpop.xlane.xlu0 %1321
      %v1323 = vmul.f32 %v1301, 0.00390625
      %v1324 = vmul.f32 %v1304, 0.00390625
      %v1325 = vmul.f32 %v1307, 0.00390625
      %v1326 = vmul.f32 %v1310, 0.00390625
      %v1327 = vmul.f32 %v1313, 0.00390625
      %v1328 = vmul.f32 %v1316, 0.00390625
      %v1329 = vmul.f32 %v1319, 0.00390625
      %v1330 = vmul.f32 %v1322, 0.00390625
      %v1331 = vmul.f32 %v1275, %v1275
      %v1332 = vmul.f32 %v1276, %v1276
      %v1333 = vmul.f32 %v1277, %v1277
      %v1334 = vmul.f32 %v1278, %v1278
      %v1335 = vmul.f32 %v1279, %v1279
      %v1336 = vmul.f32 %v1280, %v1280
      %v1337 = vmul.f32 %v1281, %v1281
      %v1338 = vmul.f32 %v1282, %v1282
      %v1339 = vsub.f32 %v1323, %v1331
      %v1340 = vsub.f32 %v1324, %v1332
      %v1341 = vsub.f32 %v1325, %v1333
      %v1342 = vsub.f32 %v1326, %v1334
      %v1343 = vsub.f32 %v1327, %v1335
      %v1344 = vsub.f32 %v1328, %v1336
      %v1345 = vsub.f32 %v1329, %v1337
      %v1346 = vsub.f32 %v1330, %v1338
      %v1347 = vadd.f32 %v1339, 1e-05
      %v1348 = vadd.f32 %v1340, 1e-05
      %v1349 = vadd.f32 %v1341, 1e-05
      %v1350 = vadd.f32 %v1342, 1e-05
      %v1351 = vadd.f32 %v1343, 1e-05
      %v1352 = vadd.f32 %v1344, 1e-05
      %v1353 = vadd.f32 %v1345, 1e-05
      %v1354 = vadd.f32 %v1346, 1e-05
      %v1355 = vrsqrt.pop %v1347
      %v1356 = vrsqrt.pop %v1348
      %v1357 = vrsqrt.pop %v1349
      %v1358 = vrsqrt.pop %v1350
      %v1359 = vrsqrt.pop %v1351
      %v1360 = vrsqrt.pop %v1352
      %v1361 = vrsqrt.pop %v1353
      %v1362 = vrsqrt.pop %v1354
      %v1363 = vmul.f32 %v1355, %v1243
      %v1364 = vmul.f32 %v1356, %v1244
      %v1365 = vmul.f32 %v1357, %v1245
      %v1366 = vmul.f32 %v1358, %v1246
      %v1367 = vmul.f32 %v1359, %v1247
      %v1368 = vmul.f32 %v1360, %v1248
      %v1369 = vmul.f32 %v1361, %v1249
      %v1370 = vmul.f32 %v1362, %v1250
      %v1371 = vmul.f32 %v1275, %v1363
      %v1372 = vmul.f32 %v1276, %v1364
      %v1373 = vmul.f32 %v1277, %v1365
      %v1374 = vmul.f32 %v1278, %v1366
      %v1375 = vmul.f32 %v1279, %v1367
      %v1376 = vmul.f32 %v1280, %v1368
      %v1377 = vmul.f32 %v1281, %v1369
      %v1378 = vmul.f32 %v1282, %v1370
      %1387 = vrot.lane.b32.xlu0 %v1371, 1
      %v1388 = vpop.permute.xlu0 %1387
      %1389 = vrot.lane.b32.xlu0 %v1372, 1
      %v1390 = vpop.permute.xlu0 %1389
      %1391 = vrot.lane.b32.xlu0 %v1373, 1
      %v1392 = vpop.permute.xlu0 %1391
      %1393 = vrot.lane.b32.xlu0 %v1374, 1
      %v1394 = vpop.permute.xlu0 %1393
      %1395 = vrot.lane.b32.xlu0 %v1375, 1
      %v1396 = vpop.permute.xlu0 %1395
      %1397 = vrot.lane.b32.xlu0 %v1376, 1
      %v1398 = vpop.permute.xlu0 %1397
      %1399 = vrot.lane.b32.xlu0 %v1377, 1
      %v1400 = vpop.permute.xlu0 %1399
      %1401 = vrot.lane.b32.xlu0 %v1378, 1
      %v1402 = vpop.permute.xlu0 %1401
      %v1411 = vsub.f32 %v1243, %v1388
      %v1412 = vsub.f32 %v1244, %v1390
      %v1413 = vsub.f32 %v1245, %v1392
      %v1414 = vsub.f32 %v1246, %v1394
      %v1415 = vsub.f32 %v1247, %v1396
      %v1416 = vsub.f32 %v1248, %v1398
      %v1417 = vsub.f32 %v1249, %v1400
      %v1418 = vsub.f32 %v1250, %v1402
      %1420 = vset.pattern.permute.xlu0 0
      %1421 = vperm.xlu0 %1420, %v1363
      %v1422 = vpop.permute.xlu0 %1421
      %1425 = vset.pattern.permute.xlu0 0
      %1426 = vperm.xlu0 %1425, %v1364
      %v1427 = vpop.permute.xlu0 %1426
      %1430 = vset.pattern.permute.xlu0 0
      %1431 = vperm.xlu0 %1430, %v1365
      %v1432 = vpop.permute.xlu0 %1431
      %1435 = vset.pattern.permute.xlu0 0
      %1436 = vperm.xlu0 %1435, %v1366
      %v1437 = vpop.permute.xlu0 %1436
      %1440 = vset.pattern.permute.xlu0 0
      %1441 = vperm.xlu0 %1440, %v1367
      %v1442 = vpop.permute.xlu0 %1441
      %1445 = vset.pattern.permute.xlu0 0
      %1446 = vperm.xlu0 %1445, %v1368
      %v1447 = vpop.permute.xlu0 %1446
      %1450 = vset.pattern.permute.xlu0 0
      %1451 = vperm.xlu0 %1450, %v1369
      %v1452 = vpop.permute.xlu0 %1451
      %1455 = vset.pattern.permute.xlu0 0
      %1456 = vperm.xlu0 %1455, %v1370
      %v1457 = vpop.permute.xlu0 %1456
      %v1459 = vmul.f32 %v1205, %v1422
      %v1460 = vmul.f32 %v1207, %v1422
      %v1461 = vmul.f32 %v1209, %v1427
      %v1462 = vmul.f32 %v1211, %v1427
      %v1463 = vmul.f32 %v1215, %v1432
      %v1464 = vmul.f32 %v1217, %v1432
      %v1465 = vmul.f32 %v1219, %v1437
      %v1466 = vmul.f32 %v1221, %v1437
      %v1467 = vmul.f32 %v1225, %v1442
      %v1468 = vmul.f32 %v1227, %v1442
      %v1469 = vmul.f32 %v1229, %v1447
      %v1470 = vmul.f32 %v1231, %v1447
      %v1471 = vmul.f32 %v1235, %v1452
      %v1472 = vmul.f32 %v1237, %v1452
      %v1473 = vmul.f32 %v1239, %v1457
      %v1474 = vmul.f32 %v1241, %v1457
      %1476 = vset.pattern.permute.xlu0 1
      %1477 = vperm.xlu0 %1476, %v1411
      %v1478 = vpop.permute.xlu0 %1477
      %1481 = vset.pattern.permute.xlu0 1
      %1482 = vperm.xlu0 %1481, %v1412
      %v1483 = vpop.permute.xlu0 %1482
      %1486 = vset.pattern.permute.xlu0 1
      %1487 = vperm.xlu0 %1486, %v1413
      %v1488 = vpop.permute.xlu0 %1487
      %1491 = vset.pattern.permute.xlu0 1
      %1492 = vperm.xlu0 %1491, %v1414
      %v1493 = vpop.permute.xlu0 %1492
      %1496 = vset.pattern.permute.xlu0 1
      %1497 = vperm.xlu0 %1496, %v1415
      %v1498 = vpop.permute.xlu0 %1497
      %1501 = vset.pattern.permute.xlu0 1
      %1502 = vperm.xlu0 %1501, %v1416
      %v1503 = vpop.permute.xlu0 %1502
      %1506 = vset.pattern.permute.xlu0 1
      %1507 = vperm.xlu0 %1506, %v1417
      %v1508 = vpop.permute.xlu0 %1507
      %1511 = vset.pattern.permute.xlu0 1
      %1512 = vperm.xlu0 %1511, %v1418
      %v1513 = vpop.permute.xlu0 %1512
      %v1515 = vadd.f32 %v1459, %v1478
      %v1516 = vadd.f32 %v1460, %v1478
      %v1517 = vadd.f32 %v1461, %v1483
      %v1518 = vadd.f32 %v1462, %v1483
      %v1519 = vadd.f32 %v1463, %v1488
      %v1520 = vadd.f32 %v1464, %v1488
      %v1521 = vadd.f32 %v1465, %v1493
      %v1522 = vadd.f32 %v1466, %v1493
      %v1523 = vadd.f32 %v1467, %v1498
      %v1524 = vadd.f32 %v1468, %v1498
      %v1525 = vadd.f32 %v1469, %v1503
      %v1526 = vadd.f32 %v1470, %v1503
      %v1527 = vadd.f32 %v1471, %v1508
      %v1528 = vadd.f32 %v1472, %v1508
      %v1529 = vadd.f32 %v1473, %v1513
      %v1530 = vadd.f32 %v1474, %v1513
      %v1531 = vmax.f32 %v1515, 0.0
      %v1532 = vmax.f32 %v1516, 0.0
      %v1533 = vmax.f32 %v1517, 0.0
      %v1534 = vmax.f32 %v1518, 0.0
      %v1535 = vmax.f32 %v1519, 0.0
      %v1536 = vmax.f32 %v1520, 0.0
      %v1537 = vmax.f32 %v1521, 0.0
      %v1538 = vmax.f32 %v1522, 0.0
      %v1539 = vmax.f32 %v1523, 0.0
      %v1540 = vmax.f32 %v1524, 0.0
      %v1541 = vmax.f32 %v1525, 0.0
      %v1542 = vmax.f32 %v1526, 0.0
      %v1543 = vmax.f32 %v1527, 0.0
      %v1544 = vmax.f32 %v1528, 0.0
      %v1545 = vmax.f32 %v1529, 0.0
      %v1546 = vmax.f32 %v1530, 0.0
      %1547 = vrot.lane.b32.xlu0 %v1531, 16
      %v1548 = vpop.permute.xlu0 %1547
      %1549 = vrot.lane.b32.xlu0 %v1533, 16
      %v1550 = vpop.permute.xlu0 %1549
      %1551 = vrot.lane.b32.xlu0 %v1535, 16
      %v1552 = vpop.permute.xlu0 %1551
      %1553 = vrot.lane.b32.xlu0 %v1537, 16
      %v1554 = vpop.permute.xlu0 %1553
      %1555 = vrot.lane.b32.xlu0 %v1539, 16
      %v1556 = vpop.permute.xlu0 %1555
      %1557 = vrot.lane.b32.xlu0 %v1541, 16
      %v1558 = vpop.permute.xlu0 %1557
      %1559 = vrot.lane.b32.xlu0 %v1543, 16
      %v1560 = vpop.permute.xlu0 %1559
      %1561 = vrot.lane.b32.xlu0 %v1545, 16
      %v1562 = vpop.permute.xlu0 %1561
      %1563 = vrot.lane.b32.xlu0 %v1532, 16
      %v1564 = vpop.permute.xlu0 %1563
      %1565 = vrot.lane.b32.xlu0 %v1534, 16
      %v1566 = vpop.permute.xlu0 %1565
      %1567 = vrot.lane.b32.xlu0 %v1536, 16
      %v1568 = vpop.permute.xlu0 %1567
      %1569 = vrot.lane.b32.xlu0 %v1538, 16
      %v1570 = vpop.permute.xlu0 %1569
      %1571 = vrot.lane.b32.xlu0 %v1540, 16
      %v1572 = vpop.permute.xlu0 %1571
      %1573 = vrot.lane.b32.xlu0 %v1542, 16
      %v1574 = vpop.permute.xlu0 %1573
      %1575 = vrot.lane.b32.xlu0 %v1544, 16
      %v1576 = vpop.permute.xlu0 %1575
      %1577 = vrot.lane.b32.xlu0 %v1546, 16
      %v1578 = vpop.permute.xlu0 %1577
      %v1579 = vsel %vm287, %v1548, %v1564
      %v1580 = vsel %vm287, %v1550, %v1566
      %v1581 = vsel %vm287, %v1552, %v1568
      %v1582 = vsel %vm287, %v1554, %v1570
      %v1583 = vsel %vm287, %v1556, %v1572
      %v1584 = vsel %vm287, %v1558, %v1574
      %v1585 = vsel %vm287, %v1560, %v1576
      %v1586 = vsel %vm287, %v1562, %v1578
      %v1587 = vsel %vm287, %v1564, %v1548
      %v1588 = vsel %vm287, %v1566, %v1550
      %v1589 = vsel %vm287, %v1568, %v1552
      %v1590 = vsel %vm287, %v1570, %v1554
      %v1591 = vsel %vm287, %v1572, %v1556
      %v1592 = vsel %vm287, %v1574, %v1558
      %v1593 = vsel %vm287, %v1576, %v1560
      %v1594 = vsel %vm287, %v1578, %v1562
      %1595 = vrot.lane.b32.xlu0 %v1531, 112
      %v1596 = vpop.permute.xlu0 %1595
      %1597 = vrot.lane.b32.xlu0 %v1533, 112
      %v1598 = vpop.permute.xlu0 %1597
      %1599 = vrot.lane.b32.xlu0 %v1535, 112
      %v1600 = vpop.permute.xlu0 %1599
      %1601 = vrot.lane.b32.xlu0 %v1537, 112
      %v1602 = vpop.permute.xlu0 %1601
      %1603 = vrot.lane.b32.xlu0 %v1539, 112
      %v1604 = vpop.permute.xlu0 %1603
      %1605 = vrot.lane.b32.xlu0 %v1541, 112
      %v1606 = vpop.permute.xlu0 %1605
      %1607 = vrot.lane.b32.xlu0 %v1543, 112
      %v1608 = vpop.permute.xlu0 %1607
      %1609 = vrot.lane.b32.xlu0 %v1545, 112
      %v1610 = vpop.permute.xlu0 %1609
      %1611 = vrot.lane.b32.xlu0 %v1532, 112
      %v1612 = vpop.permute.xlu0 %1611
      %1613 = vrot.lane.b32.xlu0 %v1534, 112
      %v1614 = vpop.permute.xlu0 %1613
      %1615 = vrot.lane.b32.xlu0 %v1536, 112
      %v1616 = vpop.permute.xlu0 %1615
      %1617 = vrot.lane.b32.xlu0 %v1538, 112
      %v1618 = vpop.permute.xlu0 %1617
      %1619 = vrot.lane.b32.xlu0 %v1540, 112
      %v1620 = vpop.permute.xlu0 %1619
      %1621 = vrot.lane.b32.xlu0 %v1542, 112
      %v1622 = vpop.permute.xlu0 %1621
      %1623 = vrot.lane.b32.xlu0 %v1544, 112
      %v1624 = vpop.permute.xlu0 %1623
      %1625 = vrot.lane.b32.xlu0 %v1546, 112
      %v1626 = vpop.permute.xlu0 %1625
      %v1627 = vsel %vm336, %v1596, %v1612
      %v1628 = vsel %vm336, %v1598, %v1614
      %v1629 = vsel %vm336, %v1600, %v1616
      %v1630 = vsel %vm336, %v1602, %v1618
      %v1631 = vsel %vm336, %v1604, %v1620
      %v1632 = vsel %vm336, %v1606, %v1622
      %v1633 = vsel %vm336, %v1608, %v1624
      %v1634 = vsel %vm336, %v1610, %v1626
      %v1635 = vsel %vm336, %v1612, %v1596
      %v1636 = vsel %vm336, %v1614, %v1598
      %v1637 = vsel %vm336, %v1616, %v1600
      %v1638 = vsel %vm336, %v1618, %v1602
      %v1639 = vsel %vm336, %v1620, %v1604
      %v1640 = vsel %vm336, %v1622, %v1606
      %v1641 = vsel %vm336, %v1624, %v1608
      %v1642 = vsel %vm336, %v1626, %v1610
      %v1643 = vsel %vm362, %v1627, %v1587
      %v1644 = vsel %vm363, %v1635, %v1579
      %v1645 = vsel %vm362, %v1628, %v1588
      %v1646 = vsel %vm363, %v1636, %v1580
      %v1647 = vsel %vm362, %v1629, %v1589
      %v1648 = vsel %vm363, %v1637, %v1581
      %v1649 = vsel %vm362, %v1630, %v1590
      %v1650 = vsel %vm363, %v1638, %v1582
      %v1651 = vsel %vm362, %v1631, %v1591
      %v1652 = vsel %vm363, %v1639, %v1583
      %v1653 = vsel %vm362, %v1632, %v1592
      %v1654 = vsel %vm363, %v1640, %v1584
      %v1655 = vsel %vm362, %v1633, %v1593
      %v1656 = vsel %vm363, %v1641, %v1585
      %v1657 = vsel %vm362, %v1634, %v1594
      %v1658 = vsel %vm363, %v1642, %v1586
      %v1659 = vsel %vm389, %v1587, %v1627
      %v1660 = vsel %vm390, %v1579, %v1635
      %v1661 = vsel %vm389, %v1588, %v1628
      %v1662 = vsel %vm390, %v1580, %v1636
      %v1663 = vsel %vm389, %v1589, %v1629
      %v1664 = vsel %vm390, %v1581, %v1637
      %v1665 = vsel %vm389, %v1590, %v1630
      %v1666 = vsel %vm390, %v1582, %v1638
      %v1667 = vsel %vm389, %v1591, %v1631
      %v1668 = vsel %vm390, %v1583, %v1639
      %v1669 = vsel %vm389, %v1592, %v1632
      %v1670 = vsel %vm390, %v1584, %v1640
      %v1671 = vsel %vm389, %v1593, %v1633
      %v1672 = vsel %vm390, %v1585, %v1641
      %v1673 = vsel %vm389, %v1594, %v1634
      %v1674 = vsel %vm390, %v1586, %v1642
      %1675 = vrot.lane.b32.xlu0 %v1643, 1
      %v1676 = vpop.permute.xlu0 %1675
      %1677 = vrot.lane.b32.xlu0 %v1645, 1
      %v1678 = vpop.permute.xlu0 %1677
      %1679 = vrot.lane.b32.xlu0 %v1647, 1
      %v1680 = vpop.permute.xlu0 %1679
      %1681 = vrot.lane.b32.xlu0 %v1649, 1
      %v1682 = vpop.permute.xlu0 %1681
      %1683 = vrot.lane.b32.xlu0 %v1651, 1
      %v1684 = vpop.permute.xlu0 %1683
      %1685 = vrot.lane.b32.xlu0 %v1653, 1
      %v1686 = vpop.permute.xlu0 %1685
      %1687 = vrot.lane.b32.xlu0 %v1655, 1
      %v1688 = vpop.permute.xlu0 %1687
      %1689 = vrot.lane.b32.xlu0 %v1657, 1
      %v1690 = vpop.permute.xlu0 %1689
      %1691 = vrot.lane.b32.xlu0 %v1644, 1
      %v1692 = vpop.permute.xlu0 %1691
      %1693 = vrot.lane.b32.xlu0 %v1646, 1
      %v1694 = vpop.permute.xlu0 %1693
      %1695 = vrot.lane.b32.xlu0 %v1648, 1
      %v1696 = vpop.permute.xlu0 %1695
      %1697 = vrot.lane.b32.xlu0 %v1650, 1
      %v1698 = vpop.permute.xlu0 %1697
      %1699 = vrot.lane.b32.xlu0 %v1652, 1
      %v1700 = vpop.permute.xlu0 %1699
      %1701 = vrot.lane.b32.xlu0 %v1654, 1
      %v1702 = vpop.permute.xlu0 %1701
      %1703 = vrot.lane.b32.xlu0 %v1656, 1
      %v1704 = vpop.permute.xlu0 %1703
      %1705 = vrot.lane.b32.xlu0 %v1658, 1
      %v1706 = vpop.permute.xlu0 %1705
      %v1707 = vsel %vm439, %v1676, %v1692
      %v1708 = vsel %vm439, %v1678, %v1694
      %v1709 = vsel %vm439, %v1680, %v1696
      %v1710 = vsel %vm439, %v1682, %v1698
      %v1711 = vsel %vm439, %v1684, %v1700
      %v1712 = vsel %vm439, %v1686, %v1702
      %v1713 = vsel %vm439, %v1688, %v1704
      %v1714 = vsel %vm439, %v1690, %v1706
      %v1715 = vsel %vm439, %v1692, %v1676
      %v1716 = vsel %vm439, %v1694, %v1678
      %v1717 = vsel %vm439, %v1696, %v1680
      %v1718 = vsel %vm439, %v1698, %v1682
      %v1719 = vsel %vm439, %v1700, %v1684
      %v1720 = vsel %vm439, %v1702, %v1686
      %v1721 = vsel %vm439, %v1704, %v1688
      %v1722 = vsel %vm439, %v1706, %v1690
      %1723 = vrot.lane.b32.xlu0 %v1643, 127
      %v1724 = vpop.permute.xlu0 %1723
      %1725 = vrot.lane.b32.xlu0 %v1645, 127
      %v1726 = vpop.permute.xlu0 %1725
      %1727 = vrot.lane.b32.xlu0 %v1647, 127
      %v1728 = vpop.permute.xlu0 %1727
      %1729 = vrot.lane.b32.xlu0 %v1649, 127
      %v1730 = vpop.permute.xlu0 %1729
      %1731 = vrot.lane.b32.xlu0 %v1651, 127
      %v1732 = vpop.permute.xlu0 %1731
      %1733 = vrot.lane.b32.xlu0 %v1653, 127
      %v1734 = vpop.permute.xlu0 %1733
      %1735 = vrot.lane.b32.xlu0 %v1655, 127
      %v1736 = vpop.permute.xlu0 %1735
      %1737 = vrot.lane.b32.xlu0 %v1657, 127
      %v1738 = vpop.permute.xlu0 %1737
      %1739 = vrot.lane.b32.xlu0 %v1644, 127
      %v1740 = vpop.permute.xlu0 %1739
      %1741 = vrot.lane.b32.xlu0 %v1646, 127
      %v1742 = vpop.permute.xlu0 %1741
      %1743 = vrot.lane.b32.xlu0 %v1648, 127
      %v1744 = vpop.permute.xlu0 %1743
      %1745 = vrot.lane.b32.xlu0 %v1650, 127
      %v1746 = vpop.permute.xlu0 %1745
      %1747 = vrot.lane.b32.xlu0 %v1652, 127
      %v1748 = vpop.permute.xlu0 %1747
      %1749 = vrot.lane.b32.xlu0 %v1654, 127
      %v1750 = vpop.permute.xlu0 %1749
      %1751 = vrot.lane.b32.xlu0 %v1656, 127
      %v1752 = vpop.permute.xlu0 %1751
      %1753 = vrot.lane.b32.xlu0 %v1658, 127
      %v1754 = vpop.permute.xlu0 %1753
      %v1755 = vsel %vm488, %v1724, %v1740
      %v1756 = vsel %vm488, %v1726, %v1742
      %v1757 = vsel %vm488, %v1728, %v1744
      %v1758 = vsel %vm488, %v1730, %v1746
      %v1759 = vsel %vm488, %v1732, %v1748
      %v1760 = vsel %vm488, %v1734, %v1750
      %v1761 = vsel %vm488, %v1736, %v1752
      %v1762 = vsel %vm488, %v1738, %v1754
      %v1763 = vsel %vm488, %v1740, %v1724
      %v1764 = vsel %vm488, %v1742, %v1726
      %v1765 = vsel %vm488, %v1744, %v1728
      %v1766 = vsel %vm488, %v1746, %v1730
      %v1767 = vsel %vm488, %v1748, %v1732
      %v1768 = vsel %vm488, %v1750, %v1734
      %v1769 = vsel %vm488, %v1752, %v1736
      %v1770 = vsel %vm488, %v1754, %v1738
      %v1771 = vsel %vm514, %v1755, %v1715
      %v1772 = vsel %vm515, %v1763, %v1707
      %v1773 = vsel %vm514, %v1756, %v1716
      %v1774 = vsel %vm515, %v1764, %v1708
      %v1775 = vsel %vm514, %v1757, %v1717
      %v1776 = vsel %vm515, %v1765, %v1709
      %v1777 = vsel %vm514, %v1758, %v1718
      %v1778 = vsel %vm515, %v1766, %v1710
      %v1779 = vsel %vm514, %v1759, %v1719
      %v1780 = vsel %vm515, %v1767, %v1711
      %v1781 = vsel %vm514, %v1760, %v1720
      %v1782 = vsel %vm515, %v1768, %v1712
      %v1783 = vsel %vm514, %v1761, %v1721
      %v1784 = vsel %vm515, %v1769, %v1713
      %v1785 = vsel %vm514, %v1762, %v1722
      %v1786 = vsel %vm515, %v1770, %v1714
      %v1787 = vsel %vm541, %v1715, %v1755
      %v1788 = vsel %vm542, %v1707, %v1763
      %v1789 = vsel %vm541, %v1716, %v1756
      %v1790 = vsel %vm542, %v1708, %v1764
      %v1791 = vsel %vm541, %v1717, %v1757
      %v1792 = vsel %vm542, %v1709, %v1765
      %v1793 = vsel %vm541, %v1718, %v1758
      %v1794 = vsel %vm542, %v1710, %v1766
      %v1795 = vsel %vm541, %v1719, %v1759
      %v1796 = vsel %vm542, %v1711, %v1767
      %v1797 = vsel %vm541, %v1720, %v1760
      %v1798 = vsel %vm542, %v1712, %v1768
      %v1799 = vsel %vm541, %v1721, %v1761
      %v1800 = vsel %vm542, %v1713, %v1769
      %v1801 = vsel %vm541, %v1722, %v1762
      %v1802 = vsel %vm542, %v1714, %v1770
      %v1803 = vpack.c.bf16 %v1773, %v1771
      %v1804 = vpack.c.bf16 %v1774, %v1772
      %v1805 = vpack.c.bf16 %v1777, %v1775
      %v1806 = vpack.c.bf16 %v1778, %v1776
      %v1807 = vpack.c.bf16 %v1781, %v1779
      %v1808 = vpack.c.bf16 %v1782, %v1780
      %v1809 = vpack.c.bf16 %v1785, %v1783
      %v1810 = vpack.c.bf16 %v1786, %v1784
      %v1811 = vpack.c.bf16 %v1645, %v1643
      %v1812 = vpack.c.bf16 %v1646, %v1644
      %v1813 = vpack.c.bf16 %v1649, %v1647
      %v1814 = vpack.c.bf16 %v1650, %v1648
      %v1815 = vpack.c.bf16 %v1653, %v1651
      %v1816 = vpack.c.bf16 %v1654, %v1652
      %v1817 = vpack.c.bf16 %v1657, %v1655
      %v1818 = vpack.c.bf16 %v1658, %v1656
      %v1819 = vpack.c.bf16 %v1789, %v1787
      %v1820 = vpack.c.bf16 %v1790, %v1788
      %v1821 = vpack.c.bf16 %v1793, %v1791
      %v1822 = vpack.c.bf16 %v1794, %v1792
      %v1823 = vpack.c.bf16 %v1797, %v1795
      %v1824 = vpack.c.bf16 %v1798, %v1796
      %v1825 = vpack.c.bf16 %v1801, %v1799
      %v1826 = vpack.c.bf16 %v1802, %v1800
      %1827 = vrot.lane.b32.xlu0 %v1531, 1
      %v1828 = vpop.permute.xlu0 %1827
      %1829 = vrot.lane.b32.xlu0 %v1533, 1
      %v1830 = vpop.permute.xlu0 %1829
      %1831 = vrot.lane.b32.xlu0 %v1535, 1
      %v1832 = vpop.permute.xlu0 %1831
      %1833 = vrot.lane.b32.xlu0 %v1537, 1
      %v1834 = vpop.permute.xlu0 %1833
      %1835 = vrot.lane.b32.xlu0 %v1539, 1
      %v1836 = vpop.permute.xlu0 %1835
      %1837 = vrot.lane.b32.xlu0 %v1541, 1
      %v1838 = vpop.permute.xlu0 %1837
      %1839 = vrot.lane.b32.xlu0 %v1543, 1
      %v1840 = vpop.permute.xlu0 %1839
      %1841 = vrot.lane.b32.xlu0 %v1545, 1
      %v1842 = vpop.permute.xlu0 %1841
      %1843 = vrot.lane.b32.xlu0 %v1532, 1
      %v1844 = vpop.permute.xlu0 %1843
      %1845 = vrot.lane.b32.xlu0 %v1534, 1
      %v1846 = vpop.permute.xlu0 %1845
      %1847 = vrot.lane.b32.xlu0 %v1536, 1
      %v1848 = vpop.permute.xlu0 %1847
      %1849 = vrot.lane.b32.xlu0 %v1538, 1
      %v1850 = vpop.permute.xlu0 %1849
      %1851 = vrot.lane.b32.xlu0 %v1540, 1
      %v1852 = vpop.permute.xlu0 %1851
      %1853 = vrot.lane.b32.xlu0 %v1542, 1
      %v1854 = vpop.permute.xlu0 %1853
      %1855 = vrot.lane.b32.xlu0 %v1544, 1
      %v1856 = vpop.permute.xlu0 %1855
      %1857 = vrot.lane.b32.xlu0 %v1546, 1
      %v1858 = vpop.permute.xlu0 %1857
      %v1859 = vsel %vm439, %v1828, %v1844
      %v1860 = vsel %vm439, %v1830, %v1846
      %v1861 = vsel %vm439, %v1832, %v1848
      %v1862 = vsel %vm439, %v1834, %v1850
      %v1863 = vsel %vm439, %v1836, %v1852
      %v1864 = vsel %vm439, %v1838, %v1854
      %v1865 = vsel %vm439, %v1840, %v1856
      %v1866 = vsel %vm439, %v1842, %v1858
      %v1867 = vsel %vm439, %v1844, %v1828
      %v1868 = vsel %vm439, %v1846, %v1830
      %v1869 = vsel %vm439, %v1848, %v1832
      %v1870 = vsel %vm439, %v1850, %v1834
      %v1871 = vsel %vm439, %v1852, %v1836
      %v1872 = vsel %vm439, %v1854, %v1838
      %v1873 = vsel %vm439, %v1856, %v1840
      %v1874 = vsel %vm439, %v1858, %v1842
      %1875 = vrot.lane.b32.xlu0 %v1531, 127
      %v1876 = vpop.permute.xlu0 %1875
      %1877 = vrot.lane.b32.xlu0 %v1533, 127
      %v1878 = vpop.permute.xlu0 %1877
      %1879 = vrot.lane.b32.xlu0 %v1535, 127
      %v1880 = vpop.permute.xlu0 %1879
      %1881 = vrot.lane.b32.xlu0 %v1537, 127
      %v1882 = vpop.permute.xlu0 %1881
      %1883 = vrot.lane.b32.xlu0 %v1539, 127
      %v1884 = vpop.permute.xlu0 %1883
      %1885 = vrot.lane.b32.xlu0 %v1541, 127
      %v1886 = vpop.permute.xlu0 %1885
      %1887 = vrot.lane.b32.xlu0 %v1543, 127
      %v1888 = vpop.permute.xlu0 %1887
      %1889 = vrot.lane.b32.xlu0 %v1545, 127
      %v1890 = vpop.permute.xlu0 %1889
      %1891 = vrot.lane.b32.xlu0 %v1532, 127
      %v1892 = vpop.permute.xlu0 %1891
      %1893 = vrot.lane.b32.xlu0 %v1534, 127
      %v1894 = vpop.permute.xlu0 %1893
      %1895 = vrot.lane.b32.xlu0 %v1536, 127
      %v1896 = vpop.permute.xlu0 %1895
      %1897 = vrot.lane.b32.xlu0 %v1538, 127
      %v1898 = vpop.permute.xlu0 %1897
      %1899 = vrot.lane.b32.xlu0 %v1540, 127
      %v1900 = vpop.permute.xlu0 %1899
      %1901 = vrot.lane.b32.xlu0 %v1542, 127
      %v1902 = vpop.permute.xlu0 %1901
      %1903 = vrot.lane.b32.xlu0 %v1544, 127
      %v1904 = vpop.permute.xlu0 %1903
      %1905 = vrot.lane.b32.xlu0 %v1546, 127
      %v1906 = vpop.permute.xlu0 %1905
      %v1907 = vsel %vm488, %v1876, %v1892
      %v1908 = vsel %vm488, %v1878, %v1894
      %v1909 = vsel %vm488, %v1880, %v1896
      %v1910 = vsel %vm488, %v1882, %v1898
      %v1911 = vsel %vm488, %v1884, %v1900
      %v1912 = vsel %vm488, %v1886, %v1902
      %v1913 = vsel %vm488, %v1888, %v1904
      %v1914 = vsel %vm488, %v1890, %v1906
      %v1915 = vsel %vm488, %v1892, %v1876
      %v1916 = vsel %vm488, %v1894, %v1878
      %v1917 = vsel %vm488, %v1896, %v1880
      %v1918 = vsel %vm488, %v1898, %v1882
      %v1919 = vsel %vm488, %v1900, %v1884
      %v1920 = vsel %vm488, %v1902, %v1886
      %v1921 = vsel %vm488, %v1904, %v1888
      %v1922 = vsel %vm488, %v1906, %v1890
      %v1923 = vsel %vm514, %v1907, %v1867
      %v1924 = vsel %vm515, %v1915, %v1859
      %v1925 = vsel %vm514, %v1908, %v1868
      %v1926 = vsel %vm515, %v1916, %v1860
      %v1927 = vsel %vm514, %v1909, %v1869
      %v1928 = vsel %vm515, %v1917, %v1861
      %v1929 = vsel %vm514, %v1910, %v1870
      %v1930 = vsel %vm515, %v1918, %v1862
      %v1931 = vsel %vm514, %v1911, %v1871
      %v1932 = vsel %vm515, %v1919, %v1863
      %v1933 = vsel %vm514, %v1912, %v1872
      %v1934 = vsel %vm515, %v1920, %v1864
      %v1935 = vsel %vm514, %v1913, %v1873
      %v1936 = vsel %vm515, %v1921, %v1865
      %v1937 = vsel %vm514, %v1914, %v1874
      %v1938 = vsel %vm515, %v1922, %v1866
      %v1939 = vsel %vm541, %v1867, %v1907
      %v1940 = vsel %vm542, %v1859, %v1915
      %v1941 = vsel %vm541, %v1868, %v1908
      %v1942 = vsel %vm542, %v1860, %v1916
      %v1943 = vsel %vm541, %v1869, %v1909
      %v1944 = vsel %vm542, %v1861, %v1917
      %v1945 = vsel %vm541, %v1870, %v1910
      %v1946 = vsel %vm542, %v1862, %v1918
      %v1947 = vsel %vm541, %v1871, %v1911
      %v1948 = vsel %vm542, %v1863, %v1919
      %v1949 = vsel %vm541, %v1872, %v1912
      %v1950 = vsel %vm542, %v1864, %v1920
      %v1951 = vsel %vm541, %v1873, %v1913
      %v1952 = vsel %vm542, %v1865, %v1921
      %v1953 = vsel %vm541, %v1874, %v1914
      %v1954 = vsel %vm542, %v1866, %v1922
      %v1955 = vpack.c.bf16 %v1925, %v1923
      %v1956 = vpack.c.bf16 %v1926, %v1924
      %v1957 = vpack.c.bf16 %v1929, %v1927
      %v1958 = vpack.c.bf16 %v1930, %v1928
      %v1959 = vpack.c.bf16 %v1933, %v1931
      %v1960 = vpack.c.bf16 %v1934, %v1932
      %v1961 = vpack.c.bf16 %v1937, %v1935
      %v1962 = vpack.c.bf16 %v1938, %v1936
      %v1963 = vpack.c.bf16 %v1533, %v1531
      %v1964 = vpack.c.bf16 %v1534, %v1532
      %v1965 = vpack.c.bf16 %v1537, %v1535
      %v1966 = vpack.c.bf16 %v1538, %v1536
      %v1967 = vpack.c.bf16 %v1541, %v1539
      %v1968 = vpack.c.bf16 %v1542, %v1540
      %v1969 = vpack.c.bf16 %v1545, %v1543
      %v1970 = vpack.c.bf16 %v1546, %v1544
      %v1971 = vpack.c.bf16 %v1941, %v1939
      %v1972 = vpack.c.bf16 %v1942, %v1940
      %v1973 = vpack.c.bf16 %v1945, %v1943
      %v1974 = vpack.c.bf16 %v1946, %v1944
      %v1975 = vpack.c.bf16 %v1949, %v1947
      %v1976 = vpack.c.bf16 %v1950, %v1948
      %v1977 = vpack.c.bf16 %v1953, %v1951
      %v1978 = vpack.c.bf16 %v1954, %v1952
      %1979 = vrot.lane.b32.xlu0 %v1659, 1
      %v1980 = vpop.permute.xlu0 %1979
      %1981 = vrot.lane.b32.xlu0 %v1661, 1
      %v1982 = vpop.permute.xlu0 %1981
      %1983 = vrot.lane.b32.xlu0 %v1663, 1
      %v1984 = vpop.permute.xlu0 %1983
      %1985 = vrot.lane.b32.xlu0 %v1665, 1
      %v1986 = vpop.permute.xlu0 %1985
      %1987 = vrot.lane.b32.xlu0 %v1667, 1
      %v1988 = vpop.permute.xlu0 %1987
      %1989 = vrot.lane.b32.xlu0 %v1669, 1
      %v1990 = vpop.permute.xlu0 %1989
      %1991 = vrot.lane.b32.xlu0 %v1671, 1
      %v1992 = vpop.permute.xlu0 %1991
      %1993 = vrot.lane.b32.xlu0 %v1673, 1
      %v1994 = vpop.permute.xlu0 %1993
      %1995 = vrot.lane.b32.xlu0 %v1660, 1
      %v1996 = vpop.permute.xlu0 %1995
      %1997 = vrot.lane.b32.xlu0 %v1662, 1
      %v1998 = vpop.permute.xlu0 %1997
      %1999 = vrot.lane.b32.xlu0 %v1664, 1
      %v2000 = vpop.permute.xlu0 %1999
      %2001 = vrot.lane.b32.xlu0 %v1666, 1
      %v2002 = vpop.permute.xlu0 %2001
      %2003 = vrot.lane.b32.xlu0 %v1668, 1
      %v2004 = vpop.permute.xlu0 %2003
      %2005 = vrot.lane.b32.xlu0 %v1670, 1
      %v2006 = vpop.permute.xlu0 %2005
      %2007 = vrot.lane.b32.xlu0 %v1672, 1
      %v2008 = vpop.permute.xlu0 %2007
      %2009 = vrot.lane.b32.xlu0 %v1674, 1
      %v2010 = vpop.permute.xlu0 %2009
      %v2011 = vsel %vm439, %v1980, %v1996
      %v2012 = vsel %vm439, %v1982, %v1998
      %v2013 = vsel %vm439, %v1984, %v2000
      %v2014 = vsel %vm439, %v1986, %v2002
      %v2015 = vsel %vm439, %v1988, %v2004
      %v2016 = vsel %vm439, %v1990, %v2006
      %v2017 = vsel %vm439, %v1992, %v2008
      %v2018 = vsel %vm439, %v1994, %v2010
      %v2019 = vsel %vm439, %v1996, %v1980
      %v2020 = vsel %vm439, %v1998, %v1982
      %v2021 = vsel %vm439, %v2000, %v1984
      %v2022 = vsel %vm439, %v2002, %v1986
      %v2023 = vsel %vm439, %v2004, %v1988
      %v2024 = vsel %vm439, %v2006, %v1990
      %v2025 = vsel %vm439, %v2008, %v1992
      %v2026 = vsel %vm439, %v2010, %v1994
      %2027 = vrot.lane.b32.xlu0 %v1659, 127
      %v2028 = vpop.permute.xlu0 %2027
      %2029 = vrot.lane.b32.xlu0 %v1661, 127
      %v2030 = vpop.permute.xlu0 %2029
      %2031 = vrot.lane.b32.xlu0 %v1663, 127
      %v2032 = vpop.permute.xlu0 %2031
      %2033 = vrot.lane.b32.xlu0 %v1665, 127
      %v2034 = vpop.permute.xlu0 %2033
      %2035 = vrot.lane.b32.xlu0 %v1667, 127
      %v2036 = vpop.permute.xlu0 %2035
      %2037 = vrot.lane.b32.xlu0 %v1669, 127
      %v2038 = vpop.permute.xlu0 %2037
      %2039 = vrot.lane.b32.xlu0 %v1671, 127
      %v2040 = vpop.permute.xlu0 %2039
      %2041 = vrot.lane.b32.xlu0 %v1673, 127
      %v2042 = vpop.permute.xlu0 %2041
      %2043 = vrot.lane.b32.xlu0 %v1660, 127
      %v2044 = vpop.permute.xlu0 %2043
      %2045 = vrot.lane.b32.xlu0 %v1662, 127
      %v2046 = vpop.permute.xlu0 %2045
      %2047 = vrot.lane.b32.xlu0 %v1664, 127
      %v2048 = vpop.permute.xlu0 %2047
      %2049 = vrot.lane.b32.xlu0 %v1666, 127
      %v2050 = vpop.permute.xlu0 %2049
      %2051 = vrot.lane.b32.xlu0 %v1668, 127
      %v2052 = vpop.permute.xlu0 %2051
      %2053 = vrot.lane.b32.xlu0 %v1670, 127
      %v2054 = vpop.permute.xlu0 %2053
      %2055 = vrot.lane.b32.xlu0 %v1672, 127
      %v2056 = vpop.permute.xlu0 %2055
      %2057 = vrot.lane.b32.xlu0 %v1674, 127
      %v2058 = vpop.permute.xlu0 %2057
      %v2059 = vsel %vm488, %v2028, %v2044
      %v2060 = vsel %vm488, %v2030, %v2046
      %v2061 = vsel %vm488, %v2032, %v2048
      %v2062 = vsel %vm488, %v2034, %v2050
      %v2063 = vsel %vm488, %v2036, %v2052
      %v2064 = vsel %vm488, %v2038, %v2054
      %v2065 = vsel %vm488, %v2040, %v2056
      %v2066 = vsel %vm488, %v2042, %v2058
      %v2067 = vsel %vm488, %v2044, %v2028
      %v2068 = vsel %vm488, %v2046, %v2030
      %v2069 = vsel %vm488, %v2048, %v2032
      %v2070 = vsel %vm488, %v2050, %v2034
      %v2071 = vsel %vm488, %v2052, %v2036
      %v2072 = vsel %vm488, %v2054, %v2038
      %v2073 = vsel %vm488, %v2056, %v2040
      %v2074 = vsel %vm488, %v2058, %v2042
      %v2075 = vsel %vm514, %v2059, %v2019
      %v2076 = vsel %vm515, %v2067, %v2011
      %v2077 = vsel %vm514, %v2060, %v2020
      %v2078 = vsel %vm515, %v2068, %v2012
      %v2079 = vsel %vm514, %v2061, %v2021
      %v2080 = vsel %vm515, %v2069, %v2013
      %v2081 = vsel %vm514, %v2062, %v2022
      %v2082 = vsel %vm515, %v2070, %v2014
      %v2083 = vsel %vm514, %v2063, %v2023
      %v2084 = vsel %vm515, %v2071, %v2015
      %v2085 = vsel %vm514, %v2064, %v2024
      %v2086 = vsel %vm515, %v2072, %v2016
      %v2087 = vsel %vm514, %v2065, %v2025
      %v2088 = vsel %vm515, %v2073, %v2017
      %v2089 = vsel %vm514, %v2066, %v2026
      %v2090 = vsel %vm515, %v2074, %v2018
      %v2091 = vsel %vm541, %v2019, %v2059
      %v2092 = vsel %vm542, %v2011, %v2067
      %v2093 = vsel %vm541, %v2020, %v2060
      %v2094 = vsel %vm542, %v2012, %v2068
      %v2095 = vsel %vm541, %v2021, %v2061
      %v2096 = vsel %vm542, %v2013, %v2069
      %v2097 = vsel %vm541, %v2022, %v2062
      %v2098 = vsel %vm542, %v2014, %v2070
      %v2099 = vsel %vm541, %v2023, %v2063
      %v2100 = vsel %vm542, %v2015, %v2071
      %v2101 = vsel %vm541, %v2024, %v2064
      %v2102 = vsel %vm542, %v2016, %v2072
      %v2103 = vsel %vm541, %v2025, %v2065
      %v2104 = vsel %vm542, %v2017, %v2073
      %v2105 = vsel %vm541, %v2026, %v2066
      %v2106 = vsel %vm542, %v2018, %v2074
      %v2107 = vpack.c.bf16 %v2077, %v2075
      %v2108 = vpack.c.bf16 %v2078, %v2076
      %v2109 = vpack.c.bf16 %v2081, %v2079
      %v2110 = vpack.c.bf16 %v2082, %v2080
      %v2111 = vpack.c.bf16 %v2085, %v2083
      %v2112 = vpack.c.bf16 %v2086, %v2084
      %v2113 = vpack.c.bf16 %v2089, %v2087
      %v2114 = vpack.c.bf16 %v2090, %v2088
      %v2115 = vpack.c.bf16 %v1661, %v1659
      %v2116 = vpack.c.bf16 %v1662, %v1660
      %v2117 = vpack.c.bf16 %v1665, %v1663
      %v2118 = vpack.c.bf16 %v1666, %v1664
      %v2119 = vpack.c.bf16 %v1669, %v1667
      %v2120 = vpack.c.bf16 %v1670, %v1668
      %v2121 = vpack.c.bf16 %v1673, %v1671
      %v2122 = vpack.c.bf16 %v1674, %v1672
      %v2123 = vpack.c.bf16 %v2093, %v2091
      %v2124 = vpack.c.bf16 %v2094, %v2092
      %v2125 = vpack.c.bf16 %v2097, %v2095
      %v2126 = vpack.c.bf16 %v2098, %v2096
      %v2127 = vpack.c.bf16 %v2101, %v2099
      %v2128 = vpack.c.bf16 %v2102, %v2100
      %v2129 = vpack.c.bf16 %v2105, %v2103
      %v2130 = vpack.c.bf16 %v2106, %v2104
      %v2131 = vld [vmem:[%s2] sm:$0xff]
      %v2132 = vld [vmem:[%s2 + $0x8] sm:$0xff]
      %v2133 = vld [vmem:[%s2 + $0x10] sm:$0xf]
      %v2134 = vld [vmem:[%s2 + $0x14] sm:$0xff]
      %v2135 = vld [vmem:[%s2 + $0x1c] sm:$0xff]
      %v2136 = vld [vmem:[%s2 + $0x24] sm:$0xf]
      %v2137 = vld [vmem:[%s2 + $0x28] sm:$0xff]
      %v2138 = vld [vmem:[%s2 + $0x30] sm:$0xff]
      %v2139 = vld [vmem:[%s2 + $0x38] sm:$0xf]
      %v2140 = vld [vmem:[%s2 + $0x3c] sm:$0xff]
      %v2141 = vld [vmem:[%s2 + $0x44] sm:$0xff]
      %v2142 = vld [vmem:[%s2 + $0x4c] sm:$0xf]
      %v2143 = vld [vmem:[%s2 + $0x50] sm:$0xff]
      %v2144 = vld [vmem:[%s2 + $0x58] sm:$0xff]
      %v2145 = vld [vmem:[%s2 + $0x60] sm:$0xf]
      %v2146 = vld [vmem:[%s2 + $0x64] sm:$0xff]
      %v2147 = vld [vmem:[%s2 + $0x6c] sm:$0xff]
      %v2148 = vld [vmem:[%s2 + $0x74] sm:$0xf]
      %v2149 = vld [vmem:[%s2 + $0x78] sm:$0xff]
      %v2150 = vld [vmem:[%s2 + $0x80] sm:$0xff]
      %v2151 = vld [vmem:[%s2 + $0x88] sm:$0xf]
      %v2152 = vld [vmem:[%s2 + $0x8c] sm:$0xff]
      %v2153 = vld [vmem:[%s2 + $0x94] sm:$0xff]
      %v2154 = vld [vmem:[%s2 + $0x9c] sm:$0xf]
      %v2179 = vunpack.c.l.b16 %v2131
      %v2180 = vunpack.c.h.b16 %v2131
      %v2181 = vunpack.c.l.b16 %v2132
      %v2182 = vunpack.c.h.b16 %v2132
      %v2183 = vunpack.c.l.b16 %v2133
      %v2184 = vunpack.c.l.b16 %v2134
      %v2185 = vunpack.c.h.b16 %v2134
      %v2186 = vunpack.c.l.b16 %v2135
      %v2187 = vunpack.c.h.b16 %v2135
      %v2188 = vunpack.c.l.b16 %v2136
      %v2189 = vunpack.c.l.b16 %v2137
      %v2190 = vunpack.c.h.b16 %v2137
      %v2191 = vunpack.c.l.b16 %v2138
      %v2192 = vunpack.c.h.b16 %v2138
      %v2193 = vunpack.c.l.b16 %v2139
      %v2194 = vunpack.c.l.b16 %v2140
      %v2195 = vunpack.c.h.b16 %v2140
      %v2196 = vunpack.c.l.b16 %v2141
      %v2197 = vunpack.c.h.b16 %v2141
      %v2198 = vunpack.c.l.b16 %v2142
      %v2199 = vunpack.c.l.b16 %v2143
      %v2200 = vunpack.c.h.b16 %v2143
      %v2201 = vunpack.c.l.b16 %v2144
      %v2202 = vunpack.c.h.b16 %v2144
      %v2203 = vunpack.c.l.b16 %v2145
      %v2204 = vunpack.c.l.b16 %v2146
      %v2205 = vunpack.c.h.b16 %v2146
      %v2206 = vunpack.c.l.b16 %v2147
      %v2207 = vunpack.c.h.b16 %v2147
      %v2208 = vunpack.c.l.b16 %v2148
      %v2209 = vunpack.c.l.b16 %v2149
      %v2210 = vunpack.c.h.b16 %v2149
      %v2211 = vunpack.c.l.b16 %v2150
      %v2212 = vunpack.c.h.b16 %v2150
      %v2213 = vunpack.c.l.b16 %v2151
      %v2214 = vunpack.c.l.b16 %v2152
      %v2215 = vunpack.c.h.b16 %v2152
      %v2216 = vunpack.c.l.b16 %v2153
      %v2217 = vunpack.c.h.b16 %v2153
      %v2218 = vunpack.c.l.b16 %v2154
      %v2219 = vpack.c.b16 %v2184, %v2179
      %v2220 = vpack.c.b16 %v2185, %v2180
      %v2221 = vpack.c.b16 %v2186, %v2181
      %v2222 = vpack.c.b16 %v2187, %v2182
      %v2223 = vpack.c.b16 %v2188, %v2183
      %v2224 = vpack.c.b16 %v2194, %v2189
      %v2225 = vpack.c.b16 %v2195, %v2190
      %v2226 = vpack.c.b16 %v2196, %v2191
      %v2227 = vpack.c.b16 %v2197, %v2192
      %v2228 = vpack.c.b16 %v2198, %v2193
      %v2229 = vpack.c.b16 %v2204, %v2199
      %v2230 = vpack.c.b16 %v2205, %v2200
      %v2231 = vpack.c.b16 %v2206, %v2201
      %v2232 = vpack.c.b16 %v2207, %v2202
      %v2233 = vpack.c.b16 %v2208, %v2203
      %v2234 = vpack.c.b16 %v2214, %v2209
      %v2235 = vpack.c.b16 %v2215, %v2210
      %v2236 = vpack.c.b16 %v2216, %v2211
      %v2237 = vpack.c.b16 %v2217, %v2212
      %v2238 = vpack.c.b16 %v2218, %v2213
      %v2256 = vsel %vm1011, %v2223, 0
      %v2259 = vsel %vm1011, %v2228, 0
      %v2262 = vsel %vm1011, %v2233, 0
      %v2265 = vsel %vm1011, %v2238, 0
      %2267 = vmatprep.subr.bf16.mxu0 %v1818
      %2268 = vmatpush1.bf16.msra.mxu0 %v1817
      %2269 = vmatprep.subr.bf16.mxu0 %v1816
      %2270 = vmatpush1.bf16.msra.mxu0 %v1815
      %2271 = vmatprep.subr.bf16.mxu0 %v1814
      %2272 = vmatpush1.bf16.msra.mxu0 %v1813
      %2273 = vmatprep.subr.bf16.mxu0 %v1812
      %2274 = vmatpush1.bf16.msra.mxu0 %v1811
      %2275 = vmatprep.subr.bf16.mxu0 %v1810
      %2276 = vmatpush1.bf16.msra.mxu0 %v1809
      %2277 = vmatprep.subr.bf16.mxu0 %v1808
      %2278 = vmatpush1.bf16.msra.mxu0 %v1807
      %2279 = vmatprep.subr.bf16.mxu0 %v1806
      %2280 = vmatpush1.bf16.msra.mxu0 %v1805
      %2281 = vmatprep.subr.bf16.mxu0 %v1804
      %2282 = vmatpush1.bf16.msra.mxu0 %v1803
      %2283 = vmatprep.subr.bf16.mxu0 %v1962
      %2284 = vmatpush2.bf16.msra.mxu0 %v1961
      %2285 = vmatprep.subr.bf16.mxu0 %v1960
      %2286 = vmatpush2.bf16.msra.mxu0 %v1959
      %2287 = vmatprep.subr.bf16.mxu0 %v1958
      %2288 = vmatpush2.bf16.msra.mxu0 %v1957
      %2289 = vmatprep.subr.bf16.mxu0 %v1956
      %2290 = vmatpush2.bf16.msra.mxu0 %v1955
      %2291 = vmatprep.subr.bf16.mxu0 %v1826
      %2292 = vmatpush2.bf16.msra.mxu0 %v1825
      %2293 = vmatprep.subr.bf16.mxu0 %v1824
      %2294 = vmatpush2.bf16.msra.mxu0 %v1823
      %2295 = vmatprep.subr.bf16.mxu0 %v1822
      %2296 = vmatpush2.bf16.msra.mxu0 %v1821
      %2297 = vmatprep.subr.bf16.mxu0 %v1820
      %2298 = vmatpush2.bf16.msra.mxu0 %v1819
      %2299 = vmatprep.mubr.bf16.mxu0 %v2220
      %2300 = vmatmul.mubr.bf16.gmra.mxu0 %v2219
      %v2301 = vpop.f32.mrf.mxu0
      %v2302 = vadd.f32 0.0, %v2301
      %v2303 = vpop.f32.mrf.mxu0
      %v2304 = vadd.f32 0.0, %v2303
      %v2305 = vpop.f32.mrf.mxu0
      %v2306 = vadd.f32 0.0, %v2305
      %v2307 = vpop.f32.mrf.mxu0
      %v2308 = vadd.f32 0.0, %v2307
      %2309 = vmatprep.mubr.bf16.mxu0 %v2225
      %2310 = vmatmul.mubr.bf16.gmra.mxu0 %v2224
      %v2311 = vpop.f32.mrf.mxu0
      %v2312 = vadd.f32 0.0, %v2311
      %v2313 = vpop.f32.mrf.mxu0
      %v2314 = vadd.f32 0.0, %v2313
      %v2315 = vpop.f32.mrf.mxu0
      %v2316 = vadd.f32 0.0, %v2315
      %v2317 = vpop.f32.mrf.mxu0
      %v2318 = vadd.f32 0.0, %v2317
      %2319 = vmatprep.mubr.bf16.mxu0 %v2230
      %2320 = vmatmul.mubr.bf16.gmra.mxu0 %v2229
      %v2321 = vpop.f32.mrf.mxu0
      %v2322 = vadd.f32 0.0, %v2321
      %v2323 = vpop.f32.mrf.mxu0
      %v2324 = vadd.f32 0.0, %v2323
      %v2325 = vpop.f32.mrf.mxu0
      %v2326 = vadd.f32 0.0, %v2325
      %v2327 = vpop.f32.mrf.mxu0
      %v2328 = vadd.f32 0.0, %v2327
      %2329 = vmatprep.mubr.bf16.mxu0 %v2235
      %2330 = vmatmul.mubr.bf16.gmra.mxu0 %v2234
      %v2331 = vpop.f32.mrf.mxu0
      %v2332 = vadd.f32 0.0, %v2331
      %v2333 = vpop.f32.mrf.mxu0
      %v2334 = vadd.f32 0.0, %v2333
      %v2335 = vpop.f32.mrf.mxu0
      %v2336 = vadd.f32 0.0, %v2335
      %v2337 = vpop.f32.mrf.mxu0
      %v2338 = vadd.f32 0.0, %v2337
      %2339 = vdwg.mxu0
      %2340 = vmatprep.subr.bf16.mxu0 %v1978
      %2341 = vmatpush1.bf16.msra.mxu0 %v1977
      %2342 = vmatprep.subr.bf16.mxu0 %v1976
      %2343 = vmatpush1.bf16.msra.mxu0 %v1975
      %2344 = vmatprep.subr.bf16.mxu0 %v1974
      %2345 = vmatpush1.bf16.msra.mxu0 %v1973
      %2346 = vmatprep.subr.bf16.mxu0 %v1972
      %2347 = vmatpush1.bf16.msra.mxu0 %v1971
      %2348 = vmatprep.subr.bf16.mxu0 %v1970
      %2349 = vmatpush1.bf16.msra.mxu0 %v1969
      %2350 = vmatprep.subr.bf16.mxu0 %v1968
      %2351 = vmatpush1.bf16.msra.mxu0 %v1967
      %2352 = vmatprep.subr.bf16.mxu0 %v1966
      %2353 = vmatpush1.bf16.msra.mxu0 %v1965
      %2354 = vmatprep.subr.bf16.mxu0 %v1964
      %2355 = vmatpush1.bf16.msra.mxu0 %v1963
      %2356 = vmatprep.subr.bf16.mxu0 %v2122
      %2357 = vmatpush2.bf16.msra.mxu0 %v2121
      %2358 = vmatprep.subr.bf16.mxu0 %v2120
      %2359 = vmatpush2.bf16.msra.mxu0 %v2119
      %2360 = vmatprep.subr.bf16.mxu0 %v2118
      %2361 = vmatpush2.bf16.msra.mxu0 %v2117
      %2362 = vmatprep.subr.bf16.mxu0 %v2116
      %2363 = vmatpush2.bf16.msra.mxu0 %v2115
      %2364 = vmatprep.subr.bf16.mxu0 %v2114
      %2365 = vmatpush2.bf16.msra.mxu0 %v2113
      %2366 = vmatprep.subr.bf16.mxu0 %v2112
      %2367 = vmatpush2.bf16.msra.mxu0 %v2111
      %2368 = vmatprep.subr.bf16.mxu0 %v2110
      %2369 = vmatpush2.bf16.msra.mxu0 %v2109
      %2370 = vmatprep.subr.bf16.mxu0 %v2108
      %2371 = vmatpush2.bf16.msra.mxu0 %v2107
      %2372 = vmatprep.mubr.bf16.mxu0 %v2222
      %2373 = vmatmul.mubr.bf16.gmra.mxu0 %v2221
      %v2374 = vpop.f32.mrf.mxu0
      %v2375 = vadd.f32 %v2302, %v2374
      %v2376 = vpop.f32.mrf.mxu0
      %v2377 = vadd.f32 %v2304, %v2376
      %v2378 = vpop.f32.mrf.mxu0
      %v2379 = vadd.f32 %v2306, %v2378
      %v2380 = vpop.f32.mrf.mxu0
      %v2381 = vadd.f32 %v2308, %v2380
      %2382 = vmatprep.mubr.bf16.mxu0 %v2227
      %2383 = vmatmul.mubr.bf16.gmra.mxu0 %v2226
      %v2384 = vpop.f32.mrf.mxu0
      %v2385 = vadd.f32 %v2312, %v2384
      %v2386 = vpop.f32.mrf.mxu0
      %v2387 = vadd.f32 %v2314, %v2386
      %v2388 = vpop.f32.mrf.mxu0
      %v2389 = vadd.f32 %v2316, %v2388
      %v2390 = vpop.f32.mrf.mxu0
      %v2391 = vadd.f32 %v2318, %v2390
      %2392 = vmatprep.mubr.bf16.mxu0 %v2232
      %2393 = vmatmul.mubr.bf16.gmra.mxu0 %v2231
      %v2394 = vpop.f32.mrf.mxu0
      %v2395 = vadd.f32 %v2322, %v2394
      %v2396 = vpop.f32.mrf.mxu0
      %v2397 = vadd.f32 %v2324, %v2396
      %v2398 = vpop.f32.mrf.mxu0
      %v2399 = vadd.f32 %v2326, %v2398
      %v2400 = vpop.f32.mrf.mxu0
      %v2401 = vadd.f32 %v2328, %v2400
      %2402 = vmatprep.mubr.bf16.mxu0 %v2237
      %2403 = vmatmul.mubr.bf16.gmra.mxu0 %v2236
      %v2404 = vpop.f32.mrf.mxu0
      %v2405 = vadd.f32 %v2332, %v2404
      %v2406 = vpop.f32.mrf.mxu0
      %v2407 = vadd.f32 %v2334, %v2406
      %v2408 = vpop.f32.mrf.mxu0
      %v2409 = vadd.f32 %v2336, %v2408
      %v2410 = vpop.f32.mrf.mxu0
      %v2411 = vadd.f32 %v2338, %v2410
      %2412 = vdwg.mxu0
      %2413 = vmatprep.subr.bf16.mxu0 0
      %2414 = vmatpush1.bf16.msra.mxu0 0
      %2415 = vmatprep.subr.bf16.mxu0 0
      %2416 = vmatpush1.bf16.msra.mxu0 0
      %2417 = vmatprep.subr.bf16.mxu0 0
      %2418 = vmatpush1.bf16.msra.mxu0 0
      %2419 = vmatprep.subr.bf16.mxu0 0
      %2420 = vmatpush1.bf16.msra.mxu0 0
      %2421 = vmatprep.subr.bf16.mxu0 %v2130
      %2422 = vmatpush1.bf16.msra.mxu0 %v2129
      %2423 = vmatprep.subr.bf16.mxu0 %v2128
      %2424 = vmatpush1.bf16.msra.mxu0 %v2127
      %2425 = vmatprep.subr.bf16.mxu0 %v2126
      %2426 = vmatpush1.bf16.msra.mxu0 %v2125
      %2427 = vmatprep.subr.bf16.mxu0 %v2124
      %2428 = vmatpush1.bf16.msra.mxu0 %v2123
      %2429 = vmatprep.subr.bf16.mxu0 0
      %2430 = vmatpush2.bf16.msra.mxu0 0
      %2431 = vmatprep.subr.bf16.mxu0 0
      %2432 = vmatpush2.bf16.msra.mxu0 0
      %2433 = vmatprep.subr.bf16.mxu0 0
      %2434 = vmatpush2.bf16.msra.mxu0 0
      %2435 = vmatprep.subr.bf16.mxu0 0
      %2436 = vmatpush2.bf16.msra.mxu0 0
      %2437 = vmatprep.subr.bf16.mxu0 0
      %2438 = vmatpush2.bf16.msra.mxu0 0
      %2439 = vmatprep.subr.bf16.mxu0 0
      %2440 = vmatpush2.bf16.msra.mxu0 0
      %2441 = vmatprep.subr.bf16.mxu0 0
      %2442 = vmatpush2.bf16.msra.mxu0 0
      %2443 = vmatprep.subr.bf16.mxu0 0
      %2444 = vmatpush2.bf16.msra.mxu0 0
      %2445 = vmatprep.mubr.bf16.mxu0 0
      %2446 = vmatmul.mubr.bf16.gmra.mxu0 %v2256
      %v2447 = vpop.f32.mrf.mxu0
      %v2448 = vadd.f32 %v2375, %v2447
      %v2449 = vpop.f32.mrf.mxu0
      %v2450 = vadd.f32 %v2377, %v2449
      %v2451 = vpop.f32.mrf.mxu0
      %v2452 = vadd.f32 %v2379, %v2451
      %v2453 = vpop.f32.mrf.mxu0
      %v2454 = vadd.f32 %v2381, %v2453
      %2455 = vmatprep.mubr.bf16.mxu0 0
      %2456 = vmatmul.mubr.bf16.gmra.mxu0 %v2259
      %v2457 = vpop.f32.mrf.mxu0
      %v2458 = vadd.f32 %v2385, %v2457
      %v2459 = vpop.f32.mrf.mxu0
      %v2460 = vadd.f32 %v2387, %v2459
      %v2461 = vpop.f32.mrf.mxu0
      %v2462 = vadd.f32 %v2389, %v2461
      %v2463 = vpop.f32.mrf.mxu0
      %v2464 = vadd.f32 %v2391, %v2463
      %2465 = vmatprep.mubr.bf16.mxu0 0
      %2466 = vmatmul.mubr.bf16.gmra.mxu0 %v2262
      %v2467 = vpop.f32.mrf.mxu0
      %v2468 = vadd.f32 %v2395, %v2467
      %v2469 = vpop.f32.mrf.mxu0
      %v2470 = vadd.f32 %v2397, %v2469
      %v2471 = vpop.f32.mrf.mxu0
      %v2472 = vadd.f32 %v2399, %v2471
      %v2473 = vpop.f32.mrf.mxu0
      %v2474 = vadd.f32 %v2401, %v2473
      %2475 = vmatprep.mubr.bf16.mxu0 0
      %2476 = vmatmul.mubr.bf16.gmra.mxu0 %v2265
      %v2477 = vpop.f32.mrf.mxu0
      %v2478 = vadd.f32 %v2405, %v2477
      %v2479 = vpop.f32.mrf.mxu0
      %v2480 = vadd.f32 %v2407, %v2479
      %v2481 = vpop.f32.mrf.mxu0
      %v2482 = vadd.f32 %v2409, %v2481
      %v2483 = vpop.f32.mrf.mxu0
      %v2484 = vadd.f32 %v2411, %v2483
      %2485 = vdwg.mxu0
      %v2486 = vadd.f32 %v2448, %v2450
      %2487 = vadd.xlane.f32.xlu0 %v2486
      %v2488 = vpop.xlane.xlu0 %2487
      %v2489 = vadd.f32 %v2452, %v2454
      %2490 = vadd.xlane.f32.xlu0 %v2489
      %v2491 = vpop.xlane.xlu0 %2490
      %v2492 = vadd.f32 %v2458, %v2460
      %2493 = vadd.xlane.f32.xlu0 %v2492
      %v2494 = vpop.xlane.xlu0 %2493
      %v2495 = vadd.f32 %v2462, %v2464
      %2496 = vadd.xlane.f32.xlu0 %v2495
      %v2497 = vpop.xlane.xlu0 %2496
      %v2498 = vadd.f32 %v2468, %v2470
      %2499 = vadd.xlane.f32.xlu0 %v2498
      %v2500 = vpop.xlane.xlu0 %2499
      %v2501 = vadd.f32 %v2472, %v2474
      %2502 = vadd.xlane.f32.xlu0 %v2501
      %v2503 = vpop.xlane.xlu0 %2502
      %v2504 = vadd.f32 %v2478, %v2480
      %2505 = vadd.xlane.f32.xlu0 %v2504
      %v2506 = vpop.xlane.xlu0 %2505
      %v2507 = vadd.f32 %v2482, %v2484
      %2508 = vadd.xlane.f32.xlu0 %v2507
      %v2509 = vpop.xlane.xlu0 %2508
      %v2510 = vmul.f32 %v2488, 0.00390625
      %v2511 = vmul.f32 %v2491, 0.00390625
      %v2512 = vmul.f32 %v2494, 0.00390625
      %v2513 = vmul.f32 %v2497, 0.00390625
      %v2514 = vmul.f32 %v2500, 0.00390625
      %v2515 = vmul.f32 %v2503, 0.00390625
      %v2516 = vmul.f32 %v2506, 0.00390625
      %v2517 = vmul.f32 %v2509, 0.00390625
      %v2518 = vmul.f32 %v2448, %v2448
      %v2519 = vmul.f32 %v2450, %v2450
      %v2520 = vmul.f32 %v2452, %v2452
      %v2521 = vmul.f32 %v2454, %v2454
      %v2522 = vmul.f32 %v2458, %v2458
      %v2523 = vmul.f32 %v2460, %v2460
      %v2524 = vmul.f32 %v2462, %v2462
      %v2525 = vmul.f32 %v2464, %v2464
      %v2526 = vmul.f32 %v2468, %v2468
      %v2527 = vmul.f32 %v2470, %v2470
      %v2528 = vmul.f32 %v2472, %v2472
      %v2529 = vmul.f32 %v2474, %v2474
      %v2530 = vmul.f32 %v2478, %v2478
      %v2531 = vmul.f32 %v2480, %v2480
      %v2532 = vmul.f32 %v2482, %v2482
      %v2533 = vmul.f32 %v2484, %v2484
      %v2534 = vadd.f32 %v2518, %v2519
      %2535 = vadd.xlane.f32.xlu0 %v2534
      %v2536 = vpop.xlane.xlu0 %2535
      %v2537 = vadd.f32 %v2520, %v2521
      %2538 = vadd.xlane.f32.xlu0 %v2537
      %v2539 = vpop.xlane.xlu0 %2538
      %v2540 = vadd.f32 %v2522, %v2523
      %2541 = vadd.xlane.f32.xlu0 %v2540
      %v2542 = vpop.xlane.xlu0 %2541
      %v2543 = vadd.f32 %v2524, %v2525
      %2544 = vadd.xlane.f32.xlu0 %v2543
      %v2545 = vpop.xlane.xlu0 %2544
      %v2546 = vadd.f32 %v2526, %v2527
      %2547 = vadd.xlane.f32.xlu0 %v2546
      %v2548 = vpop.xlane.xlu0 %2547
      %v2549 = vadd.f32 %v2528, %v2529
      %2550 = vadd.xlane.f32.xlu0 %v2549
      %v2551 = vpop.xlane.xlu0 %2550
      %v2552 = vadd.f32 %v2530, %v2531
      %2553 = vadd.xlane.f32.xlu0 %v2552
      %v2554 = vpop.xlane.xlu0 %2553
      %v2555 = vadd.f32 %v2532, %v2533
      %2556 = vadd.xlane.f32.xlu0 %v2555
      %v2557 = vpop.xlane.xlu0 %2556
      %v2558 = vmul.f32 %v2536, 0.00390625
      %v2559 = vmul.f32 %v2539, 0.00390625
      %v2560 = vmul.f32 %v2542, 0.00390625
      %v2561 = vmul.f32 %v2545, 0.00390625
      %v2562 = vmul.f32 %v2548, 0.00390625
      %v2563 = vmul.f32 %v2551, 0.00390625
      %v2564 = vmul.f32 %v2554, 0.00390625
      %v2565 = vmul.f32 %v2557, 0.00390625
      %v2566 = vmul.f32 %v2510, %v2510
      %v2567 = vmul.f32 %v2511, %v2511
      %v2568 = vmul.f32 %v2512, %v2512
      %v2569 = vmul.f32 %v2513, %v2513
      %v2570 = vmul.f32 %v2514, %v2514
      %v2571 = vmul.f32 %v2515, %v2515
      %v2572 = vmul.f32 %v2516, %v2516
      %v2573 = vmul.f32 %v2517, %v2517
      %v2574 = vsub.f32 %v2558, %v2566
      %v2575 = vsub.f32 %v2559, %v2567
      %v2576 = vsub.f32 %v2560, %v2568
      %v2577 = vsub.f32 %v2561, %v2569
      %v2578 = vsub.f32 %v2562, %v2570
      %v2579 = vsub.f32 %v2563, %v2571
      %v2580 = vsub.f32 %v2564, %v2572
      %v2581 = vsub.f32 %v2565, %v2573
      %v2582 = vadd.f32 %v2574, 1e-05
      %v2583 = vadd.f32 %v2575, 1e-05
      %v2584 = vadd.f32 %v2576, 1e-05
      %v2585 = vadd.f32 %v2577, 1e-05
      %v2586 = vadd.f32 %v2578, 1e-05
      %v2587 = vadd.f32 %v2579, 1e-05
      %v2588 = vadd.f32 %v2580, 1e-05
      %v2589 = vadd.f32 %v2581, 1e-05
      %v2590 = vrsqrt.pop %v2582
      %v2591 = vrsqrt.pop %v2583
      %v2592 = vrsqrt.pop %v2584
      %v2593 = vrsqrt.pop %v2585
      %v2594 = vrsqrt.pop %v2586
      %v2595 = vrsqrt.pop %v2587
      %v2596 = vrsqrt.pop %v2588
      %v2597 = vrsqrt.pop %v2589
      %v2598 = vmul.f32 %v2590, %v1243
      %v2599 = vmul.f32 %v2591, %v1244
      %v2600 = vmul.f32 %v2592, %v1245
      %v2601 = vmul.f32 %v2593, %v1246
      %v2602 = vmul.f32 %v2594, %v1247
      %v2603 = vmul.f32 %v2595, %v1248
      %v2604 = vmul.f32 %v2596, %v1249
      %v2605 = vmul.f32 %v2597, %v1250
      %v2606 = vmul.f32 %v2510, %v2598
      %v2607 = vmul.f32 %v2511, %v2599
      %v2608 = vmul.f32 %v2512, %v2600
      %v2609 = vmul.f32 %v2513, %v2601
      %v2610 = vmul.f32 %v2514, %v2602
      %v2611 = vmul.f32 %v2515, %v2603
      %v2612 = vmul.f32 %v2516, %v2604
      %v2613 = vmul.f32 %v2517, %v2605
      %2622 = vrot.lane.b32.xlu0 %v2606, 1
      %v2623 = vpop.permute.xlu0 %2622
      %2624 = vrot.lane.b32.xlu0 %v2607, 1
      %v2625 = vpop.permute.xlu0 %2624
      %2626 = vrot.lane.b32.xlu0 %v2608, 1
      %v2627 = vpop.permute.xlu0 %2626
      %2628 = vrot.lane.b32.xlu0 %v2609, 1
      %v2629 = vpop.permute.xlu0 %2628
      %2630 = vrot.lane.b32.xlu0 %v2610, 1
      %v2631 = vpop.permute.xlu0 %2630
      %2632 = vrot.lane.b32.xlu0 %v2611, 1
      %v2633 = vpop.permute.xlu0 %2632
      %2634 = vrot.lane.b32.xlu0 %v2612, 1
      %v2635 = vpop.permute.xlu0 %2634
      %2636 = vrot.lane.b32.xlu0 %v2613, 1
      %v2637 = vpop.permute.xlu0 %2636
      %v2646 = vsub.f32 %v1243, %v2623
      %v2647 = vsub.f32 %v1244, %v2625
      %v2648 = vsub.f32 %v1245, %v2627
      %v2649 = vsub.f32 %v1246, %v2629
      %v2650 = vsub.f32 %v1247, %v2631
      %v2651 = vsub.f32 %v1248, %v2633
      %v2652 = vsub.f32 %v1249, %v2635
      %v2653 = vsub.f32 %v1250, %v2637
      %2655 = vset.pattern.permute.xlu0 2
      %2656 = vperm.xlu0 %2655, %v2598
      %v2657 = vpop.permute.xlu0 %2656
      %2660 = vset.pattern.permute.xlu0 2
      %2661 = vperm.xlu0 %2660, %v2599
      %v2662 = vpop.permute.xlu0 %2661
      %2665 = vset.pattern.permute.xlu0 2
      %2666 = vperm.xlu0 %2665, %v2600
      %v2667 = vpop.permute.xlu0 %2666
      %2670 = vset.pattern.permute.xlu0 2
      %2671 = vperm.xlu0 %2670, %v2601
      %v2672 = vpop.permute.xlu0 %2671
      %2675 = vset.pattern.permute.xlu0 2
      %2676 = vperm.xlu0 %2675, %v2602
      %v2677 = vpop.permute.xlu0 %2676
      %2680 = vset.pattern.permute.xlu0 2
      %2681 = vperm.xlu0 %2680, %v2603
      %v2682 = vpop.permute.xlu0 %2681
      %2685 = vset.pattern.permute.xlu0 2
      %2686 = vperm.xlu0 %2685, %v2604
      %v2687 = vpop.permute.xlu0 %2686
      %2690 = vset.pattern.permute.xlu0 2
      %2691 = vperm.xlu0 %2690, %v2605
      %v2692 = vpop.permute.xlu0 %2691
      %v2694 = vmul.f32 %v2448, %v2657
      %v2695 = vmul.f32 %v2450, %v2657
      %v2696 = vmul.f32 %v2452, %v2662
      %v2697 = vmul.f32 %v2454, %v2662
      %v2698 = vmul.f32 %v2458, %v2667
      %v2699 = vmul.f32 %v2460, %v2667
      %v2700 = vmul.f32 %v2462, %v2672
      %v2701 = vmul.f32 %v2464, %v2672
      %v2702 = vmul.f32 %v2468, %v2677
      %v2703 = vmul.f32 %v2470, %v2677
      %v2704 = vmul.f32 %v2472, %v2682
      %v2705 = vmul.f32 %v2474, %v2682
      %v2706 = vmul.f32 %v2478, %v2687
      %v2707 = vmul.f32 %v2480, %v2687
      %v2708 = vmul.f32 %v2482, %v2692
      %v2709 = vmul.f32 %v2484, %v2692
      %2711 = vset.pattern.permute.xlu0 3
      %2712 = vperm.xlu0 %2711, %v2646
      %v2713 = vpop.permute.xlu0 %2712
      %2716 = vset.pattern.permute.xlu0 3
      %2717 = vperm.xlu0 %2716, %v2647
      %v2718 = vpop.permute.xlu0 %2717
      %2721 = vset.pattern.permute.xlu0 3
      %2722 = vperm.xlu0 %2721, %v2648
      %v2723 = vpop.permute.xlu0 %2722
      %2726 = vset.pattern.permute.xlu0 3
      %2727 = vperm.xlu0 %2726, %v2649
      %v2728 = vpop.permute.xlu0 %2727
      %2731 = vset.pattern.permute.xlu0 3
      %2732 = vperm.xlu0 %2731, %v2650
      %v2733 = vpop.permute.xlu0 %2732
      %2736 = vset.pattern.permute.xlu0 3
      %2737 = vperm.xlu0 %2736, %v2651
      %v2738 = vpop.permute.xlu0 %2737
      %2741 = vset.pattern.permute.xlu0 3
      %2742 = vperm.xlu0 %2741, %v2652
      %v2743 = vpop.permute.xlu0 %2742
      %2746 = vset.pattern.permute.xlu0 3
      %2747 = vperm.xlu0 %2746, %v2653
      %v2748 = vpop.permute.xlu0 %2747
      %v2750 = vadd.f32 %v2694, %v2713
      %v2751 = vadd.f32 %v2695, %v2713
      %v2752 = vadd.f32 %v2696, %v2718
      %v2753 = vadd.f32 %v2697, %v2718
      %v2754 = vadd.f32 %v2698, %v2723
      %v2755 = vadd.f32 %v2699, %v2723
      %v2756 = vadd.f32 %v2700, %v2728
      %v2757 = vadd.f32 %v2701, %v2728
      %v2758 = vadd.f32 %v2702, %v2733
      %v2759 = vadd.f32 %v2703, %v2733
      %v2760 = vadd.f32 %v2704, %v2738
      %v2761 = vadd.f32 %v2705, %v2738
      %v2762 = vadd.f32 %v2706, %v2743
      %v2763 = vadd.f32 %v2707, %v2743
      %v2764 = vadd.f32 %v2708, %v2748
      %v2765 = vadd.f32 %v2709, %v2748
      %v2766 = vadd.f32 %v2750, %v226
      %v2767 = vadd.f32 %v2751, %v227
      %v2768 = vadd.f32 %v2752, %v228
      %v2769 = vadd.f32 %v2753, %v229
      %v2770 = vadd.f32 %v2754, %v230
      %v2771 = vadd.f32 %v2755, %v231
      %v2772 = vadd.f32 %v2756, %v232
      %v2773 = vadd.f32 %v2757, %v233
      %v2774 = vadd.f32 %v2758, %v234
      %v2775 = vadd.f32 %v2759, %v235
      %v2776 = vadd.f32 %v2760, %v236
      %v2777 = vadd.f32 %v2761, %v237
      %v2778 = vadd.f32 %v2762, %v238
      %v2779 = vadd.f32 %v2763, %v239
      %v2780 = vadd.f32 %v2764, %v240
      %v2781 = vadd.f32 %v2765, %v241
      %2782 = vst [vmem:[%s224] sm:$0xff] %v2766
      %2783 = vst [vmem:[%s224 + $0x8] sm:$0xff] %v2767
      %2784 = vst [vmem:[%s224 + $0x10] sm:$0xff] %v2768
      %2785 = vst [vmem:[%s224 + $0x18] sm:$0xff] %v2769
      %2786 = vst [vmem:[%s224 + $0x20] sm:$0xff] %v2770
      %2787 = vst [vmem:[%s224 + $0x28] sm:$0xff] %v2771
      %2788 = vst [vmem:[%s224 + $0x30] sm:$0xff] %v2772
      %2789 = vst [vmem:[%s224 + $0x38] sm:$0xff] %v2773
      %2790 = vst [vmem:[%s224 + $0x40] sm:$0xff] %v2774
      %2791 = vst [vmem:[%s224 + $0x48] sm:$0xff] %v2775
      %2792 = vst [vmem:[%s224 + $0x50] sm:$0xff] %v2776
      %2793 = vst [vmem:[%s224 + $0x58] sm:$0xff] %v2777
      %2794 = vst [vmem:[%s224 + $0x60] sm:$0xff] %v2778
      %2795 = vst [vmem:[%s224 + $0x68] sm:$0xff] %v2779
      %2796 = vst [vmem:[%s224 + $0x70] sm:$0xff] %v2780
      %2797 = vst [vmem:[%s224 + $0x78] sm:$0xff] %v2781
      %p2798 = scmp.lt.s32.totalorder %s16, 1
      %s2799 = scalar_select %p2798, %s16, 1
      %s2800 = smul.addr %s2799, 16
      %s2801 = smul.addr %s2800, 8
      %s2802 = scalar_lea.vmem %s5, %s2801
      // Predicated region
      $region41: #{residual_separable_block.1} parent=39 // pred_check
        %p2803 = pneg %p144
      $region42: #{residual_separable_block.1} parent=39 // pred_check_branch
        %2805 = sbr.rel (%p2803) target = $region44
      $region43: #{residual_separable_block.1} parent=39 // pred_region
        _
      $region44: #{residual_separable_block.1} parent=39 // pred_fallthru
        _
    $region40: #{residual_separable_block.1} parent=5 // pred_fallthru
      _
    %p2806 = scmp.le.s32.totalorder 2, %s11
    // Predicated region
    $region45: #{residual_separable_block.1} parent=5 // pred_check
      %p2807 = pneg %p2806
    $region46: #{residual_separable_block.1} parent=5 // pred_check_branch
      %2809 = sbr.rel (%p2807) target = $region48
    $region47: #{residual_separable_block.1} parent=5 // pred_region
      %s2810 = ssub.s32 %s11, 2
      // Predicated region
      $region49: #{residual_separable_block.1} parent=47 // pred_check
        %p2811 = pneg %p150
      $region50: #{residual_separable_block.1} parent=47 // pred_check_branch
        %2813 = sbr.rel (%p2811) target = $region52
      $region51: #{residual_separable_block.1} parent=47 // pred_region
        %p2814 = scmp.lt.s32.totalorder %s17, 1
        %s2815 = scalar_select %p2814, %s17, 1
        %s2816 = smul.addr %s2815, 16
        %s2817 = smul.addr %s2816, 8
        %s2818 = scalar_lea.vmem %s5, %s2817
      $region52: #{residual_separable_block.1} parent=47 // pred_fallthru
        _
    $region48: #{residual_separable_block.1} parent=5 // pred_fallthru
      _
  $region6: #{residual_separable_block.1} parent=0 // loop_footer
    %s15 = sadd.s32 1, %s11
  $region7: #{residual_separable_block.1} parent=0 // loop_footer_branch
    %10 = sbr.rel target = $region3
  $region8: #{residual_separable_block.1} parent=0 // loop_exit
    _

</llo_original>
